<compile_context>
chip_gen: v5e
topology: v5e:2x2
jax: 0.10.0
libtpu: 0.0.40
codegen_flags: <defaults>
</compile_context>

<pallas_src>
import functools

import jax
import jax.numpy as jnp
from jax.experimental import pallas as pl
from jax.experimental.pallas import tpu as pltpu


# ----------------------------- small helpers ---------------------------------

def _act(x, kind):
    if kind == 'relu':
        return jnp.maximum(x, 0.0)
    if kind == 'silu':
        return x * jax.nn.sigmoid(x)
    if kind == 'gelu':
        return jax.nn.gelu(x, approximate=True)   # TODO(synk): exact-erf GELU
    if kind == 'leaky_relu':
        return jnp.where(x > 0, x, 0.01 * x)
    raise ValueError('Unsupported activation type')


# ----------------------------- kernel side ------------------------------------

def _resnet1d_kernel(x_ref, w1_ref, b1_ref, w2_ref, b2_ref, w3_ref, b3_ref,
                     o_ref, *, dilations, activation, matmul_dtype):
    """Fused forward over the whole depth stack for one (Bblk, L, C) tile.

    Channels-last layout: C sits on the lane axis, every conv tap is one MXU
    matmul (M = Bblk*L, K = N = C) accumulated in f32.  x stays resident in
    VMEM across all residual blocks (static unroll over depth).
    """
    Bblk, L, C = x_ref.shape
    M = Bblk * L
    x = x_ref[...].astype(jnp.float32)                       # (Bblk, L, C)

    def mdot(h2d, w):
        # (M, C) @ (C, C) on the MXU with f32 accumulation.  Weights were
        # pre-cast to matmul_dtype in the wrapper.
        return jnp.dot(h2d.astype(matmul_dtype), w,
                       preferred_element_type=jnp.float32)

    def dconv3(h, w_ref, b_ref, i, d):
        # Dilated conv, kernel 3, "same" padding (= d): three accumulated dots.
        # Tap shifts are zero-filled static-slice shifts along L (no im2col
        # buffer, no lane concat).  d is a static Python int per block.
        h2 = h.reshape(M, C)
        y = mdot(h2, w_ref[i, 1])                             # center tap
        if d < L:
            z = jnp.zeros((Bblk, d, C), jnp.float32)
            h_m = jnp.concatenate([z, h[:, :L - d, :]], axis=1)   # x[t - d]
            h_p = jnp.concatenate([h[:, d:, :], z], axis=1)       # x[t + d]
            y = y + mdot(h_m.reshape(M, C), w_ref[i, 0])
            y = y + mdot(h_p.reshape(M, C), w_ref[i, 2])
        # else: d >= L -> the +-d taps read only zero padding, contribute 0.
        return y.reshape(Bblk, L, C) + b_ref[i]               # bias (1, C) bcasts

    def conv1(h, w_ref, b_ref, i):
        y = mdot(h.reshape(M, C), w_ref[i])
        return y.reshape(Bblk, L, C) + b_ref[i]

    # Static unroll over depth: weights indexed with python ints, dilations are
    # static per block; x never leaves VMEM between residual blocks.
    for i, d in enumerate(dilations):
        h = _act(x, activation)
        h = dconv3(h, w1_ref, b1_ref, i, d)
        h = _act(h, activation)
        h = dconv3(h, w2_ref, b2_ref, i, d)
        h = _act(h, activation)
        h = conv1(h, w3_ref, b3_ref, i)
        x = x + h                                             # residual, f32

    o_ref[...] = x.astype(o_ref.dtype)


# ----------------------------- sizing helpers ---------------------------------

def _vmem_budget_bytes():
    """~75% of this generation's physical VMEM (v5e/v6e: 128 MiB, v7x: 64 MiB
    per TensorCore).  Conservative (v7x-safe) fallback if the query fails."""
    try:
        cap = int(pltpu.get_tpu_info().vmem_capacity_bytes)
    except Exception:
        cap = 64 << 20
    return max(min(cap * 3 // 4, cap - (8 << 20)), 16 << 20)


def _estimate_vmem(Bblk, L, C, n_depth, mm_bytes):
    io_tile = Bblk * L * C * 4                       # one f32 (Bblk, L, C) tile
    weights = n_depth * (7 * C * C * mm_bytes + 3 * C * 4)
    # double-buffered input + output streams (4 tiles) + ~8 tile-sized f32
    # intermediates (h, two shifted taps, dot results, casts) + single-buffered
    # weights + fixed slack.
    return 4 * io_tile + 8 * io_tile + weights + (4 << 20)


def _pick_bblk(B, L, C, n_depth, mm_bytes, budget):
    """Batch rows folded per grid step (matmul M dim = Bblk * L)."""
    if L % 8 != 0:
        return 1          # keep the (Bblk, L) -> Bblk*L collapse sublane-aligned
    divs = [d for d in range(1, B + 1) if B % d == 0]
    fits = [d for d in divs
            if _estimate_vmem(d, L, C, n_depth, mm_bytes) <= budget] or [1]
    # >= 2 grid steps: keeps both v7x TensorCores busy and gives the BlockSpec
    # pipeline a steady state to hide the (Bblk, L, C) I/O DMAs.
    multi = [d for d in fits if B // d >= 2]
    cand = multi or fits
    even = [d for d in cand if (B // d) % 2 == 0]   # balanced across 2 TCs
    cand = even or cand
    return max(cand)


# ----------------------------- wrapper ----------------------------------------

def _prepare_params(params, matmul_dtype):
    """Stack per-block params depth-leading.  Weights pre-cast to matmul_dtype
    (halves weight DMA bytes on the bf16 path); biases stay f32."""
    w1s, b1s, w2s, b2s, w3s, b3s, dils = [], [], [], [], [], [], []
    for (w1, b1, w2, b2, w3, b3), dil in params:
        w1s.append(w1); b1s.append(b1)
        w2s.append(w2); b2s.append(b2)
        w3s.append(w3); b3s.append(b3)
        dils.append(int(dil))
    return (jnp.stack(w1s).astype(matmul_dtype), jnp.stack(b1s).astype(jnp.float32),
            jnp.stack(w2s).astype(matmul_dtype), jnp.stack(b2s).astype(jnp.float32),
            jnp.stack(w3s).astype(matmul_dtype), jnp.stack(b3s).astype(jnp.float32),
            tuple(dils))


def _fallback_weight_spec(arr):
    # Known-good path: full-array block with a constant index map (fetched once
    # by the pipeline, but double-buffered in VMEM).
    n = arr.ndim
    return pl.BlockSpec(arr.shape, lambda b, _n=n: (0,) * _n)


def resnet1d_forward(x_ncl, params, activation='relu',
                     matmul_dtype=jnp.bfloat16):
    """x_ncl: PyTorch layout (B, C, L). Returns (B, C, L)."""
    B, C, L = x_ncl.shape
    x = jnp.transpose(x_ncl, (0, 2, 1))               # (B, L, C) channels-last
    # No channel padding and no output slice: the kernel works at the true C.

    w1s, b1s, w2s, b2s, w3s, b3s, dils = _prepare_params(params, matmul_dtype)
    weight_arrays = (w1s, b1s, w2s, b2s, w3s, b3s)
    n_depth = len(dils)

    mm_bytes = jnp.dtype(matmul_dtype).itemsize
    budget = _vmem_budget_bytes()
    Bblk = _pick_bblk(B, L, C, n_depth, mm_bytes, budget)

    kernel = functools.partial(_resnet1d_kernel, dilations=dils,
                               activation=activation, matmul_dtype=matmul_dtype)

    def call(single_buffer_weights):
        if single_buffer_weights:
            # Whole-array VMEM placement: one resident copy, fetched once,
            # never double-buffered (performance feedback #1).
            wspecs = [pl.BlockSpec(memory_space=pltpu.MemorySpace.VMEM)
                      for _ in weight_arrays]
        else:
            wspecs = [_fallback_weight_spec(a) for a in weight_arrays]
        return pl.pallas_call(
            kernel,
            out_shape=jax.ShapeDtypeStruct((B, L, C), x.dtype),
            grid=(B // Bblk,),
            in_specs=[pl.BlockSpec((Bblk, L, C), lambda b: (b, 0, 0))] + wspecs,
            out_specs=pl.BlockSpec((Bblk, L, C), lambda b: (b, 0, 0)),
            compiler_params=pltpu.CompilerParams(
                dimension_semantics=("parallel",),
                vmem_limit_bytes=int(budget)),
        )(x, *weight_arrays)

    try:
        out = call(True)
    except Exception:      # compatibility net: older Pallas without
        out = call(False)  # memory_space-only VMEM operand support

    return jnp.transpose(out, (0, 2, 1))


# ----------------------------- params / reference ------------------------------

def init_resnet1d_params(key, n_in, n_depth, dilation_growth_rate=1,
                         reverse_dilation=True):
    """Deterministic synthetic init mirroring the module's shapes.
    conv weights ~ kaiming_normal (std = sqrt(2/fan_in)); biases ~ U(+-1/sqrt(fan_in)).
    Weight layout here is (K, Cin, Cout) (= transposed PyTorch (Cout, Cin, K))."""
    dilations = [dilation_growth_rate ** d for d in range(n_depth)]
    if reverse_dilation:
        dilations = dilations[::-1]
    params = []
    for dil in dilations:
        key, k0, k1, k2, k3, k4, k5 = jax.random.split(key, 7)
        std3 = (2.0 / (n_in * 3)) ** 0.5
        std1 = (2.0 / (n_in * 1)) ** 0.5
        bb3 = 1.0 / (n_in * 3) ** 0.5
        bb1 = 1.0 / (n_in * 1) ** 0.5
        w1 = jax.random.normal(k0, (3, n_in, n_in), jnp.float32) * std3
        b1 = jax.random.uniform(k1, (1, n_in), jnp.float32, -bb3, bb3)
        w2 = jax.random.normal(k2, (3, n_in, n_in), jnp.float32) * std3
        b2 = jax.random.uniform(k3, (1, n_in), jnp.float32, -bb3, bb3)
        w3 = jax.random.normal(k4, (n_in, n_in), jnp.float32) * std1
        b3 = jax.random.uniform(k5, (1, n_in), jnp.float32, -bb1, bb1)
        params.append(((w1, b1, w2, b2, w3, b3), dil))
    return params


def _ref_forward(x_ncl, params, activation='relu'):
    """Pure-JAX reference (lax.conv), PyTorch NCL layout."""
    def act(v):
        return _act(v, activation)

    def conv(h, w, b, dil, pad):
        rhs = jnp.transpose(w, (2, 1, 0))        # (K,Cin,Cout) -> (Cout,Cin,K)
        y = jax.lax.conv_general_dilated(
            h, rhs, window_strides=(1,), padding=[(pad, pad)],
            rhs_dilation=(dil,), dimension_numbers=('NCH', 'OIH', 'NCH'))
        return y + b.reshape(1, -1, 1)

    x = x_ncl
    for (w1, b1, w2, b2, w3, b3), dil in params:
        h = act(x)
        h = conv(h, w1, b1, dil, dil)
        h = act(h)
        h = conv(h, w2, b2, dil, dil)
        h = act(h)
        rhs3 = jnp.transpose(w3, (1, 0))[:, :, None]          # (Cout, Cin, 1)
        h = jax.lax.conv_general_dilated(
            h, rhs3, (1,), [(0, 0)],
            dimension_numbers=('NCH', 'OIH', 'NCH')) + b3.reshape(1, -1, 1)
        x = h + x
    return x


# ----------------------------------- main --------------------------------------

if __name__ == "__main__":
    B, C, L = 2, 32, 16          # batch, channels (n_in), sequence length
    key = jax.random.PRNGKey(0)
    kx, kp1, kp2 = jax.random.split(key, 3)
    x = jax.random.normal(kx, (B, C, L), jnp.float32)        # PyTorch NCL layout

    # Config 1: n_depth=2, dilations [2, 1] (reverse_dilation).
    params = init_resnet1d_params(kp1, n_in=C, n_depth=2,
                                  dilation_growth_rate=2, reverse_dilation=True)
    ref = jax.block_until_ready(_ref_forward(x, params, activation='relu'))

    # Exact path (f32 MXU operands, f32 accumulate).
    out_f32 = jax.block_until_ready(
        resnet1d_forward(x, params, activation='relu', matmul_dtype=jnp.float32))
    assert out_f32.shape == (B, C, L)
    err = float(jnp.max(jnp.abs(out_f32 - ref)))
    assert err < 2e-4, f"f32 mismatch: max abs err {err}"

    # Default path: bf16 MXU operands, f32 accumulation + f32 residual.
    out_bf16 = jax.block_until_ready(
        resnet1d_forward(x, params, activation='relu'))
    rel = float(jnp.max(jnp.abs(out_bf16 - ref)) /
                (float(jnp.max(jnp.abs(ref))) + 1e-6))
    assert rel < 5e-2, f"bf16 relative error too large: {rel}"

    # Config 2: exercises the d >= L edge case (dilations [16, 4, 1], L = 16).
    params2 = init_resnet1d_params(kp2, n_in=C, n_depth=3,
                                   dilation_growth_rate=4, reverse_dilation=True)
    ref2 = jax.block_until_ready(_ref_forward(x, params2, activation='relu'))
    out2 = jax.block_until_ready(
        resnet1d_forward(x, params2, activation='relu', matmul_dtype=jnp.float32))
    err2 = float(jnp.max(jnp.abs(out2 - ref2)))
    assert err2 < 2e-4, f"f32 (d>=L) mismatch: max abs err {err2}"

    print("KERNEL_OK")
</pallas_src>

<mosaic_0001>
module attributes {stable_mosaic.version = 11 : i64} {
  func.func @_resnet1d_kernel(%arg0: i32, %arg1: memref<1x16x32xf32, #tpu.memory_space<vmem>>, %arg2: memref<2x3x32x32xf32, #tpu.memory_space<vmem>>, %arg3: memref<2x1x32xf32, #tpu.memory_space<vmem>>, %arg4: memref<2x3x32x32xf32, #tpu.memory_space<vmem>>, %arg5: memref<2x1x32xf32, #tpu.memory_space<vmem>>, %arg6: memref<2x32x32xf32, #tpu.memory_space<vmem>>, %arg7: memref<2x1x32xf32, #tpu.memory_space<vmem>>, %arg8: memref<1x16x32xf32, #tpu.memory_space<vmem>>) attributes {dimension_semantics = [#tpu.dimension_semantics<parallel>], iteration_bounds = array<i64: 2>, scalar_prefetch = 0 : i64, scratch_operands = 0 : i64, tpu.core_type = #tpu.core_type<tc>, window_params = [{transform_indices = @transform_0, window_bounds = array<i64: 1, 16, 32>}, {pipeline_mode = #tpu.pipeline_mode<synchronous>, transform_indices = @transform_1, window_bounds = array<i64: 2, 3, 32, 32>}, {pipeline_mode = #tpu.pipeline_mode<synchronous>, transform_indices = @transform_2, window_bounds = array<i64: 2, 1, 32>}, {pipeline_mode = #tpu.pipeline_mode<synchronous>, transform_indices = @transform_3, window_bounds = array<i64: 2, 3, 32, 32>}, {pipeline_mode = #tpu.pipeline_mode<synchronous>, transform_indices = @transform_4, window_bounds = array<i64: 2, 1, 32>}, {pipeline_mode = #tpu.pipeline_mode<synchronous>, transform_indices = @transform_5, window_bounds = array<i64: 2, 32, 32>}, {pipeline_mode = #tpu.pipeline_mode<synchronous>, transform_indices = @transform_6, window_bounds = array<i64: 2, 1, 32>}, {transform_indices = @transform_7, window_bounds = array<i64: 1, 16, 32>}]} {
    %c0 = arith.constant 0 : index
    %c0_0 = arith.constant 0 : index
    %c0_1 = arith.constant 0 : index
    %0 = vector.load %arg1[%c0, %c0_0, %c0_1] : memref<1x16x32xf32, #tpu.memory_space<vmem>>, vector<1x16x32xf32>
    %cst = arith.constant 0.000000e+00 : f32
    %1 = vector.broadcast %cst : f32 to vector<1x16x32xf32>
    %2 = arith.maximumf %0, %1 : vector<1x16x32xf32>
    %3 = vector.shape_cast %2 : vector<1x16x32xf32> to vector<16x32xf32>
    %c0_2 = arith.constant 0 : index
    %c1 = arith.constant 1 : index
    %c0_3 = arith.constant 0 : index
    %c0_4 = arith.constant 0 : index
    %4 = vector.load %arg2[%c0_2, %c1, %c0_3, %c0_4] : memref<2x3x32x32xf32, #tpu.memory_space<vmem>>, vector<1x1x32x32xf32>
    %5 = vector.shape_cast %4 : vector<1x1x32x32xf32> to vector<32x32xf32>
    %cst_5 = arith.constant dense<0.000000e+00> : vector<16x32xf32>
    %6 = tpu.matmul %3, %5, %cst_5 {dimension_numbers = #tpu.dot_dimension_numbers<[1], [0], [0], [1], [0, 0, 1, 1], [], []>} : vector<16x32xf32>, vector<32x32xf32>, vector<16x32xf32> -> vector<16x32xf32>
    %cst_6 = arith.constant 0.000000e+00 : f32
    %7 = vector.broadcast %cst_6 : f32 to vector<1x2x32xf32>
    %8 = vector.extract_strided_slice %2 {offsets = [0, 0, 0], sizes = [1, 14, 32], strides = [1, 1, 1]} : vector<1x16x32xf32> to vector<1x14x32xf32>
    %9 = tpu.concatenate %7, %8 in 1 : vector<1x2x32xf32>, vector<1x14x32xf32> -> vector<1x16x32xf32>
    %10 = vector.extract_strided_slice %2 {offsets = [0, 2, 0], sizes = [1, 14, 32], strides = [1, 1, 1]} : vector<1x16x32xf32> to vector<1x14x32xf32>
    %11 = tpu.concatenate %10, %7 in 1 : vector<1x14x32xf32>, vector<1x2x32xf32> -> vector<1x16x32xf32>
    %12 = vector.shape_cast %9 : vector<1x16x32xf32> to vector<16x32xf32>
    %c0_7 = arith.constant 0 : index
    %c0_8 = arith.constant 0 : index
    %c0_9 = arith.constant 0 : index
    %c0_10 = arith.constant 0 : index
    %13 = vector.load %arg2[%c0_7, %c0_8, %c0_9, %c0_10] : memref<2x3x32x32xf32, #tpu.memory_space<vmem>>, vector<1x1x32x32xf32>
    %14 = vector.shape_cast %13 : vector<1x1x32x32xf32> to vector<32x32xf32>
    %cst_11 = arith.constant dense<0.000000e+00> : vector<16x32xf32>
    %15 = tpu.matmul %12, %14, %cst_11 {dimension_numbers = #tpu.dot_dimension_numbers<[1], [0], [0], [1], [0, 0, 1, 1], [], []>} : vector<16x32xf32>, vector<32x32xf32>, vector<16x32xf32> -> vector<16x32xf32>
    %16 = arith.addf %6, %15 : vector<16x32xf32>
    %17 = vector.shape_cast %11 : vector<1x16x32xf32> to vector<16x32xf32>
    %c0_12 = arith.constant 0 : index
    %c2 = arith.constant 2 : index
    %c0_13 = arith.constant 0 : index
    %c0_14 = arith.constant 0 : index
    %18 = vector.load %arg2[%c0_12, %c2, %c0_13, %c0_14] : memref<2x3x32x32xf32, #tpu.memory_space<vmem>>, vector<1x1x32x32xf32>
    %19 = vector.shape_cast %18 : vector<1x1x32x32xf32> to vector<32x32xf32>
    %cst_15 = arith.constant dense<0.000000e+00> : vector<16x32xf32>
    %20 = tpu.matmul %17, %19, %cst_15 {dimension_numbers = #tpu.dot_dimension_numbers<[1], [0], [0], [1], [0, 0, 1, 1], [], []>} : vector<16x32xf32>, vector<32x32xf32>, vector<16x32xf32> -> vector<16x32xf32>
    %21 = arith.addf %16, %20 : vector<16x32xf32>
    %22 = vector.shape_cast %21 : vector<16x32xf32> to vector<1x16x32xf32>
    %c0_16 = arith.constant 0 : index
    %c0_17 = arith.constant 0 : index
    %c0_18 = arith.constant 0 : index
    %23 = vector.load %arg3[%c0_16, %c0_17, %c0_18] : memref<2x1x32xf32, #tpu.memory_space<vmem>>, vector<1x1x32xf32>
    %24 = vector.shape_cast %23 : vector<1x1x32xf32> to vector<1x32xf32>
    %25 = vector.shape_cast %24 : vector<1x32xf32> to vector<1x1x32xf32>
    %26 = vector.broadcast %25 : vector<1x1x32xf32> to vector<1x16x32xf32>
    %27 = arith.addf %22, %26 : vector<1x16x32xf32>
    %cst_19 = arith.constant 0.000000e+00 : f32
    %28 = vector.broadcast %cst_19 : f32 to vector<1x16x32xf32>
    %29 = arith.maximumf %27, %28 : vector<1x16x32xf32>
    %30 = vector.shape_cast %29 : vector<1x16x32xf32> to vector<16x32xf32>
    %c0_20 = arith.constant 0 : index
    %c1_21 = arith.constant 1 : index
    %c0_22 = arith.constant 0 : index
    %c0_23 = arith.constant 0 : index
    %31 = vector.load %arg4[%c0_20, %c1_21, %c0_22, %c0_23] : memref<2x3x32x32xf32, #tpu.memory_space<vmem>>, vector<1x1x32x32xf32>
    %32 = vector.shape_cast %31 : vector<1x1x32x32xf32> to vector<32x32xf32>
    %cst_24 = arith.constant dense<0.000000e+00> : vector<16x32xf32>
    %33 = tpu.matmul %30, %32, %cst_24 {dimension_numbers = #tpu.dot_dimension_numbers<[1], [0], [0], [1], [0, 0, 1, 1], [], []>} : vector<16x32xf32>, vector<32x32xf32>, vector<16x32xf32> -> vector<16x32xf32>
    %cst_25 = arith.constant 0.000000e+00 : f32
    %34 = vector.broadcast %cst_25 : f32 to vector<1x2x32xf32>
    %35 = vector.extract_strided_slice %29 {offsets = [0, 0, 0], sizes = [1, 14, 32], strides = [1, 1, 1]} : vector<1x16x32xf32> to vector<1x14x32xf32>
    %36 = tpu.concatenate %34, %35 in 1 : vector<1x2x32xf32>, vector<1x14x32xf32> -> vector<1x16x32xf32>
    %37 = vector.extract_strided_slice %29 {offsets = [0, 2, 0], sizes = [1, 14, 32], strides = [1, 1, 1]} : vector<1x16x32xf32> to vector<1x14x32xf32>
    %38 = tpu.concatenate %37, %34 in 1 : vector<1x14x32xf32>, vector<1x2x32xf32> -> vector<1x16x32xf32>
    %39 = vector.shape_cast %36 : vector<1x16x32xf32> to vector<16x32xf32>
    %c0_26 = arith.constant 0 : index
    %c0_27 = arith.constant 0 : index
    %c0_28 = arith.constant 0 : index
    %c0_29 = arith.constant 0 : index
    %40 = vector.load %arg4[%c0_26, %c0_27, %c0_28, %c0_29] : memref<2x3x32x32xf32, #tpu.memory_space<vmem>>, vector<1x1x32x32xf32>
    %41 = vector.shape_cast %40 : vector<1x1x32x32xf32> to vector<32x32xf32>
    %cst_30 = arith.constant dense<0.000000e+00> : vector<16x32xf32>
    %42 = tpu.matmul %39, %41, %cst_30 {dimension_numbers = #tpu.dot_dimension_numbers<[1], [0], [0], [1], [0, 0, 1, 1], [], []>} : vector<16x32xf32>, vector<32x32xf32>, vector<16x32xf32> -> vector<16x32xf32>
    %43 = arith.addf %33, %42 : vector<16x32xf32>
    %44 = vector.shape_cast %38 : vector<1x16x32xf32> to vector<16x32xf32>
    %c0_31 = arith.constant 0 : index
    %c2_32 = arith.constant 2 : index
    %c0_33 = arith.constant 0 : index
    %c0_34 = arith.constant 0 : index
    %45 = vector.load %arg4[%c0_31, %c2_32, %c0_33, %c0_34] : memref<2x3x32x32xf32, #tpu.memory_space<vmem>>, vector<1x1x32x32xf32>
    %46 = vector.shape_cast %45 : vector<1x1x32x32xf32> to vector<32x32xf32>
    %cst_35 = arith.constant dense<0.000000e+00> : vector<16x32xf32>
    %47 = tpu.matmul %44, %46, %cst_35 {dimension_numbers = #tpu.dot_dimension_numbers<[1], [0], [0], [1], [0, 0, 1, 1], [], []>} : vector<16x32xf32>, vector<32x32xf32>, vector<16x32xf32> -> vector<16x32xf32>
    %48 = arith.addf %43, %47 : vector<16x32xf32>
    %49 = vector.shape_cast %48 : vector<16x32xf32> to vector<1x16x32xf32>
    %c0_36 = arith.constant 0 : index
    %c0_37 = arith.constant 0 : index
    %c0_38 = arith.constant 0 : index
    %50 = vector.load %arg5[%c0_36, %c0_37, %c0_38] : memref<2x1x32xf32, #tpu.memory_space<vmem>>, vector<1x1x32xf32>
    %51 = vector.shape_cast %50 : vector<1x1x32xf32> to vector<1x32xf32>
    %52 = vector.shape_cast %51 : vector<1x32xf32> to vector<1x1x32xf32>
    %53 = vector.broadcast %52 : vector<1x1x32xf32> to vector<1x16x32xf32>
    %54 = arith.addf %49, %53 : vector<1x16x32xf32>
    %cst_39 = arith.constant 0.000000e+00 : f32
    %55 = vector.broadcast %cst_39 : f32 to vector<1x16x32xf32>
    %56 = arith.maximumf %54, %55 : vector<1x16x32xf32>
    %57 = vector.shape_cast %56 : vector<1x16x32xf32> to vector<16x32xf32>
    %c0_40 = arith.constant 0 : index
    %c0_41 = arith.constant 0 : index
    %c0_42 = arith.constant 0 : index
    %58 = vector.load %arg6[%c0_40, %c0_41, %c0_42] : memref<2x32x32xf32, #tpu.memory_space<vmem>>, vector<1x32x32xf32>
    %59 = vector.shape_cast %58 : vector<1x32x32xf32> to vector<32x32xf32>
    %cst_43 = arith.constant dense<0.000000e+00> : vector<16x32xf32>
    %60 = tpu.matmul %57, %59, %cst_43 {dimension_numbers = #tpu.dot_dimension_numbers<[1], [0], [0], [1], [0, 0, 1, 1], [], []>} : vector<16x32xf32>, vector<32x32xf32>, vector<16x32xf32> -> vector<16x32xf32>
    %61 = vector.shape_cast %60 : vector<16x32xf32> to vector<1x16x32xf32>
    %c0_44 = arith.constant 0 : index
    %c0_45 = arith.constant 0 : index
    %c0_46 = arith.constant 0 : index
    %62 = vector.load %arg7[%c0_44, %c0_45, %c0_46] : memref<2x1x32xf32, #tpu.memory_space<vmem>>, vector<1x1x32xf32>
    %63 = vector.shape_cast %62 : vector<1x1x32xf32> to vector<1x32xf32>
    %64 = vector.shape_cast %63 : vector<1x32xf32> to vector<1x1x32xf32>
    %65 = vector.broadcast %64 : vector<1x1x32xf32> to vector<1x16x32xf32>
    %66 = arith.addf %61, %65 : vector<1x16x32xf32>
    %67 = arith.addf %0, %66 : vector<1x16x32xf32>
    %cst_47 = arith.constant 0.000000e+00 : f32
    %68 = vector.broadcast %cst_47 : f32 to vector<1x16x32xf32>
    %69 = arith.maximumf %67, %68 : vector<1x16x32xf32>
    %70 = vector.shape_cast %69 : vector<1x16x32xf32> to vector<16x32xf32>
    %c1_48 = arith.constant 1 : index
    %c1_49 = arith.constant 1 : index
    %c0_50 = arith.constant 0 : index
    %c0_51 = arith.constant 0 : index
    %71 = vector.load %arg2[%c1_48, %c1_49, %c0_50, %c0_51] : memref<2x3x32x32xf32, #tpu.memory_space<vmem>>, vector<1x1x32x32xf32>
    %72 = vector.shape_cast %71 : vector<1x1x32x32xf32> to vector<32x32xf32>
    %cst_52 = arith.constant dense<0.000000e+00> : vector<16x32xf32>
    %73 = tpu.matmul %70, %72, %cst_52 {dimension_numbers = #tpu.dot_dimension_numbers<[1], [0], [0], [1], [0, 0, 1, 1], [], []>} : vector<16x32xf32>, vector<32x32xf32>, vector<16x32xf32> -> vector<16x32xf32>
    %cst_53 = arith.constant 0.000000e+00 : f32
    %74 = vector.broadcast %cst_53 : f32 to vector<1x1x32xf32>
    %75 = vector.extract_strided_slice %69 {offsets = [0, 0, 0], sizes = [1, 15, 32], strides = [1, 1, 1]} : vector<1x16x32xf32> to vector<1x15x32xf32>
    %76 = tpu.concatenate %74, %75 in 1 : vector<1x1x32xf32>, vector<1x15x32xf32> -> vector<1x16x32xf32>
    %77 = vector.extract_strided_slice %69 {offsets = [0, 1, 0], sizes = [1, 15, 32], strides = [1, 1, 1]} : vector<1x16x32xf32> to vector<1x15x32xf32>
    %78 = tpu.concatenate %77, %74 in 1 : vector<1x15x32xf32>, vector<1x1x32xf32> -> vector<1x16x32xf32>
    %79 = vector.shape_cast %76 : vector<1x16x32xf32> to vector<16x32xf32>
    %c1_54 = arith.constant 1 : index
    %c0_55 = arith.constant 0 : index
    %c0_56 = arith.constant 0 : index
    %c0_57 = arith.constant 0 : index
    %80 = vector.load %arg2[%c1_54, %c0_55, %c0_56, %c0_57] : memref<2x3x32x32xf32, #tpu.memory_space<vmem>>, vector<1x1x32x32xf32>
    %81 = vector.shape_cast %80 : vector<1x1x32x32xf32> to vector<32x32xf32>
    %cst_58 = arith.constant dense<0.000000e+00> : vector<16x32xf32>
    %82 = tpu.matmul %79, %81, %cst_58 {dimension_numbers = #tpu.dot_dimension_numbers<[1], [0], [0], [1], [0, 0, 1, 1], [], []>} : vector<16x32xf32>, vector<32x32xf32>, vector<16x32xf32> -> vector<16x32xf32>
    %83 = arith.addf %73, %82 : vector<16x32xf32>
    %84 = vector.shape_cast %78 : vector<1x16x32xf32> to vector<16x32xf32>
    %c1_59 = arith.constant 1 : index
    %c2_60 = arith.constant 2 : index
    %c0_61 = arith.constant 0 : index
    %c0_62 = arith.constant 0 : index
    %85 = vector.load %arg2[%c1_59, %c2_60, %c0_61, %c0_62] : memref<2x3x32x32xf32, #tpu.memory_space<vmem>>, vector<1x1x32x32xf32>
    %86 = vector.shape_cast %85 : vector<1x1x32x32xf32> to vector<32x32xf32>
    %cst_63 = arith.constant dense<0.000000e+00> : vector<16x32xf32>
    %87 = tpu.matmul %84, %86, %cst_63 {dimension_numbers = #tpu.dot_dimension_numbers<[1], [0], [0], [1], [0, 0, 1, 1], [], []>} : vector<16x32xf32>, vector<32x32xf32>, vector<16x32xf32> -> vector<16x32xf32>
    %88 = arith.addf %83, %87 : vector<16x32xf32>
    %89 = vector.shape_cast %88 : vector<16x32xf32> to vector<1x16x32xf32>
    %c1_64 = arith.constant 1 : index
    %c0_65 = arith.constant 0 : index
    %c0_66 = arith.constant 0 : index
    %90 = vector.load %arg3[%c1_64, %c0_65, %c0_66] : memref<2x1x32xf32, #tpu.memory_space<vmem>>, vector<1x1x32xf32>
    %91 = vector.shape_cast %90 : vector<1x1x32xf32> to vector<1x32xf32>
    %92 = vector.shape_cast %91 : vector<1x32xf32> to vector<1x1x32xf32>
    %93 = vector.broadcast %92 : vector<1x1x32xf32> to vector<1x16x32xf32>
    %94 = arith.addf %89, %93 : vector<1x16x32xf32>
    %cst_67 = arith.constant 0.000000e+00 : f32
    %95 = vector.broadcast %cst_67 : f32 to vector<1x16x32xf32>
    %96 = arith.maximumf %94, %95 : vector<1x16x32xf32>
    %97 = vector.shape_cast %96 : vector<1x16x32xf32> to vector<16x32xf32>
    %c1_68 = arith.constant 1 : index
    %c1_69 = arith.constant 1 : index
    %c0_70 = arith.constant 0 : index
    %c0_71 = arith.constant 0 : index
    %98 = vector.load %arg4[%c1_68, %c1_69, %c0_70, %c0_71] : memref<2x3x32x32xf32, #tpu.memory_space<vmem>>, vector<1x1x32x32xf32>
    %99 = vector.shape_cast %98 : vector<1x1x32x32xf32> to vector<32x32xf32>
    %cst_72 = arith.constant dense<0.000000e+00> : vector<16x32xf32>
    %100 = tpu.matmul %97, %99, %cst_72 {dimension_numbers = #tpu.dot_dimension_numbers<[1], [0], [0], [1], [0, 0, 1, 1], [], []>} : vector<16x32xf32>, vector<32x32xf32>, vector<16x32xf32> -> vector<16x32xf32>
    %cst_73 = arith.constant 0.000000e+00 : f32
    %101 = vector.broadcast %cst_73 : f32 to vector<1x1x32xf32>
    %102 = vector.extract_strided_slice %96 {offsets = [0, 0, 0], sizes = [1, 15, 32], strides = [1, 1, 1]} : vector<1x16x32xf32> to vector<1x15x32xf32>
    %103 = tpu.concatenate %101, %102 in 1 : vector<1x1x32xf32>, vector<1x15x32xf32> -> vector<1x16x32xf32>
    %104 = vector.extract_strided_slice %96 {offsets = [0, 1, 0], sizes = [1, 15, 32], strides = [1, 1, 1]} : vector<1x16x32xf32> to vector<1x15x32xf32>
    %105 = tpu.concatenate %104, %101 in 1 : vector<1x15x32xf32>, vector<1x1x32xf32> -> vector<1x16x32xf32>
    %106 = vector.shape_cast %103 : vector<1x16x32xf32> to vector<16x32xf32>
    %c1_74 = arith.constant 1 : index
    %c0_75 = arith.constant 0 : index
    %c0_76 = arith.constant 0 : index
    %c0_77 = arith.constant 0 : index
    %107 = vector.load %arg4[%c1_74, %c0_75, %c0_76, %c0_77] : memref<2x3x32x32xf32, #tpu.memory_space<vmem>>, vector<1x1x32x32xf32>
    %108 = vector.shape_cast %107 : vector<1x1x32x32xf32> to vector<32x32xf32>
    %cst_78 = arith.constant dense<0.000000e+00> : vector<16x32xf32>
    %109 = tpu.matmul %106, %108, %cst_78 {dimension_numbers = #tpu.dot_dimension_numbers<[1], [0], [0], [1], [0, 0, 1, 1], [], []>} : vector<16x32xf32>, vector<32x32xf32>, vector<16x32xf32> -> vector<16x32xf32>
    %110 = arith.addf %100, %109 : vector<16x32xf32>
    %111 = vector.shape_cast %105 : vector<1x16x32xf32> to vector<16x32xf32>
    %c1_79 = arith.constant 1 : index
    %c2_80 = arith.constant 2 : index
    %c0_81 = arith.constant 0 : index
    %c0_82 = arith.constant 0 : index
    %112 = vector.load %arg4[%c1_79, %c2_80, %c0_81, %c0_82] : memref<2x3x32x32xf32, #tpu.memory_space<vmem>>, vector<1x1x32x32xf32>
    %113 = vector.shape_cast %112 : vector<1x1x32x32xf32> to vector<32x32xf32>
    %cst_83 = arith.constant dense<0.000000e+00> : vector<16x32xf32>
    %114 = tpu.matmul %111, %113, %cst_83 {dimension_numbers = #tpu.dot_dimension_numbers<[1], [0], [0], [1], [0, 0, 1, 1], [], []>} : vector<16x32xf32>, vector<32x32xf32>, vector<16x32xf32> -> vector<16x32xf32>
    %115 = arith.addf %110, %114 : vector<16x32xf32>
    %116 = vector.shape_cast %115 : vector<16x32xf32> to vector<1x16x32xf32>
    %c1_84 = arith.constant 1 : index
    %c0_85 = arith.constant 0 : index
    %c0_86 = arith.constant 0 : index
    %117 = vector.load %arg5[%c1_84, %c0_85, %c0_86] : memref<2x1x32xf32, #tpu.memory_space<vmem>>, vector<1x1x32xf32>
    %118 = vector.shape_cast %117 : vector<1x1x32xf32> to vector<1x32xf32>
    %119 = vector.shape_cast %118 : vector<1x32xf32> to vector<1x1x32xf32>
    %120 = vector.broadcast %119 : vector<1x1x32xf32> to vector<1x16x32xf32>
    %121 = arith.addf %116, %120 : vector<1x16x32xf32>
    %cst_87 = arith.constant 0.000000e+00 : f32
    %122 = vector.broadcast %cst_87 : f32 to vector<1x16x32xf32>
    %123 = arith.maximumf %121, %122 : vector<1x16x32xf32>
    %124 = vector.shape_cast %123 : vector<1x16x32xf32> to vector<16x32xf32>
    %c1_88 = arith.constant 1 : index
    %c0_89 = arith.constant 0 : index
    %c0_90 = arith.constant 0 : index
    %125 = vector.load %arg6[%c1_88, %c0_89, %c0_90] : memref<2x32x32xf32, #tpu.memory_space<vmem>>, vector<1x32x32xf32>
    %126 = vector.shape_cast %125 : vector<1x32x32xf32> to vector<32x32xf32>
    %cst_91 = arith.constant dense<0.000000e+00> : vector<16x32xf32>
    %127 = tpu.matmul %124, %126, %cst_91 {dimension_numbers = #tpu.dot_dimension_numbers<[1], [0], [0], [1], [0, 0, 1, 1], [], []>} : vector<16x32xf32>, vector<32x32xf32>, vector<16x32xf32> -> vector<16x32xf32>
    %128 = vector.shape_cast %127 : vector<16x32xf32> to vector<1x16x32xf32>
    %c1_92 = arith.constant 1 : index
    %c0_93 = arith.constant 0 : index
    %c0_94 = arith.constant 0 : index
    %129 = vector.load %arg7[%c1_92, %c0_93, %c0_94] : memref<2x1x32xf32, #tpu.memory_space<vmem>>, vector<1x1x32xf32>
    %130 = vector.shape_cast %129 : vector<1x1x32xf32> to vector<1x32xf32>
    %131 = vector.shape_cast %130 : vector<1x32xf32> to vector<1x1x32xf32>
    %132 = vector.broadcast %131 : vector<1x1x32xf32> to vector<1x16x32xf32>
    %133 = arith.addf %128, %132 : vector<1x16x32xf32>
    %134 = arith.addf %67, %133 : vector<1x16x32xf32>
    %c0_95 = arith.constant 0 : index
    %c0_96 = arith.constant 0 : index
    %c0_97 = arith.constant 0 : index
    %135 = vector.load %arg8[%c0_95, %c0_96, %c0_97] : memref<1x16x32xf32, #tpu.memory_space<vmem>>, vector<1x16x32xf32>
    tpu.vector_store %arg8[%c0_95, %c0_96, %c0_97], %134 {strides = array<i32>} : memref<1x16x32xf32, #tpu.memory_space<vmem>>, vector<1x16x32xf32>,
    return
  }
  func.func @transform_0(%arg0: i32) -> (i32, i32, i32) {
    %c0_i32 = arith.constant 0 : i32
    %c0_i32_0 = arith.constant 0 : i32
    %c0_i32_1 = arith.constant 0 : i32
    return %arg0, %c0_i32, %c0_i32_0 : i32, i32, i32
  }
  func.func @transform_1(%arg0: i32) -> (i32, i32, i32, i32) {
    %c0_i32 = arith.constant 0 : i32
    %c0_i32_0 = arith.constant 0 : i32
    %c0_i32_1 = arith.constant 0 : i32
    %c0_i32_2 = arith.constant 0 : i32
    %c0_i32_3 = arith.constant 0 : i32
    return %c0_i32, %c0_i32_0, %c0_i32_1, %c0_i32_2 : i32, i32, i32, i32
  }
  func.func @transform_2(%arg0: i32) -> (i32, i32, i32) {
    %c0_i32 = arith.constant 0 : i32
    %c0_i32_0 = arith.constant 0 : i32
    %c0_i32_1 = arith.constant 0 : i32
    %c0_i32_2 = arith.constant 0 : i32
    return %c0_i32, %c0_i32_0, %c0_i32_1 : i32, i32, i32
  }
  func.func @transform_3(%arg0: i32) -> (i32, i32, i32, i32) {
    %c0_i32 = arith.constant 0 : i32
    %c0_i32_0 = arith.constant 0 : i32
    %c0_i32_1 = arith.constant 0 : i32
    %c0_i32_2 = arith.constant 0 : i32
    %c0_i32_3 = arith.constant 0 : i32
    return %c0_i32, %c0_i32_0, %c0_i32_1, %c0_i32_2 : i32, i32, i32, i32
  }
  func.func @transform_4(%arg0: i32) -> (i32, i32, i32) {
    %c0_i32 = arith.constant 0 : i32
    %c0_i32_0 = arith.constant 0 : i32
    %c0_i32_1 = arith.constant 0 : i32
    %c0_i32_2 = arith.constant 0 : i32
    return %c0_i32, %c0_i32_0, %c0_i32_1 : i32, i32, i32
  }
  func.func @transform_5(%arg0: i32) -> (i32, i32, i32) {
    %c0_i32 = arith.constant 0 : i32
    %c0_i32_0 = arith.constant 0 : i32
    %c0_i32_1 = arith.constant 0 : i32
    %c0_i32_2 = arith.constant 0 : i32
    return %c0_i32, %c0_i32_0, %c0_i32_1 : i32, i32, i32
  }
  func.func @transform_6(%arg0: i32) -> (i32, i32, i32) {
    %c0_i32 = arith.constant 0 : i32
    %c0_i32_0 = arith.constant 0 : i32
    %c0_i32_1 = arith.constant 0 : i32
    %c0_i32_2 = arith.constant 0 : i32
    return %c0_i32, %c0_i32_0, %c0_i32_1 : i32, i32, i32
  }
  func.func @transform_7(%arg0: i32) -> (i32, i32, i32) {
    %c0_i32 = arith.constant 0 : i32
    %c0_i32_0 = arith.constant 0 : i32
    %c0_i32_1 = arith.constant 0 : i32
    return %arg0, %c0_i32, %c0_i32_0 : i32, i32, i32
  }
}

module attributes {stable_mosaic.version = 11 : i64} {
  func.func @_resnet1d_kernel(%arg0: i32, %arg1: memref<1x16x32xf32, #tpu.memory_space<vmem>>, %arg2: memref<2x3x32x32xf32, #tpu.memory_space<vmem>>, %arg3: memref<2x1x32xf32, #tpu.memory_space<vmem>>, %arg4: memref<2x3x32x32xf32, #tpu.memory_space<vmem>>, %arg5: memref<2x1x32xf32, #tpu.memory_space<vmem>>, %arg6: memref<2x32x32xf32, #tpu.memory_space<vmem>>, %arg7: memref<2x1x32xf32, #tpu.memory_space<vmem>>, %arg8: memref<1x16x32xf32, #tpu.memory_space<vmem>>) attributes {dimension_semantics = [#tpu.dimension_semantics<parallel>], iteration_bounds = array<i64: 2>, scalar_prefetch = 0 : i64, scratch_operands = 0 : i64, tpu.core_type = #tpu.core_type<tc>, window_params = [{transform_indices = @transform_0, window_bounds = array<i64: 1, 16, 32>}, {pipeline_mode = #tpu.pipeline_mode<synchronous>, transform_indices = @transform_1, window_bounds = array<i64: 2, 3, 32, 32>}, {pipeline_mode = #tpu.pipeline_mode<synchronous>, transform_indices = @transform_2, window_bounds = array<i64: 2, 1, 32>}, {pipeline_mode = #tpu.pipeline_mode<synchronous>, transform_indices = @transform_3, window_bounds = array<i64: 2, 3, 32, 32>}, {pipeline_mode = #tpu.pipeline_mode<synchronous>, transform_indices = @transform_4, window_bounds = array<i64: 2, 1, 32>}, {pipeline_mode = #tpu.pipeline_mode<synchronous>, transform_indices = @transform_5, window_bounds = array<i64: 2, 32, 32>}, {pipeline_mode = #tpu.pipeline_mode<synchronous>, transform_indices = @transform_6, window_bounds = array<i64: 2, 1, 32>}, {transform_indices = @transform_7, window_bounds = array<i64: 1, 16, 32>}]} {
    %c0 = arith.constant 0 : index
    %c0_0 = arith.constant 0 : index
    %c0_1 = arith.constant 0 : index
    %0 = vector.load %arg1[%c0, %c0_0, %c0_1] : memref<1x16x32xf32, #tpu.memory_space<vmem>>, vector<1x16x32xf32>
    %cst = arith.constant 0.000000e+00 : f32
    %1 = vector.broadcast %cst : f32 to vector<1x16x32xf32>
    %2 = arith.maximumf %0, %1 : vector<1x16x32xf32>
    %3 = vector.shape_cast %2 : vector<1x16x32xf32> to vector<16x32xf32>
    %c0_2 = arith.constant 0 : index
    %c1 = arith.constant 1 : index
    %c0_3 = arith.constant 0 : index
    %c0_4 = arith.constant 0 : index
    %4 = vector.load %arg2[%c0_2, %c1, %c0_3, %c0_4] : memref<2x3x32x32xf32, #tpu.memory_space<vmem>>, vector<1x1x32x32xf32>
    %5 = vector.shape_cast %4 : vector<1x1x32x32xf32> to vector<32x32xf32>
    %cst_5 = arith.constant dense<0.000000e+00> : vector<16x32xf32>
    %6 = tpu.matmul %3, %5, %cst_5 {dimension_numbers = #tpu.dot_dimension_numbers<[1], [0], [0], [1], [0, 0, 1, 1], [], []>} : vector<16x32xf32>, vector<32x32xf32>, vector<16x32xf32> -> vector<16x32xf32>
    %cst_6 = arith.constant 0.000000e+00 : f32
    %7 = vector.broadcast %cst_6 : f32 to vector<1x2x32xf32>
    %8 = vector.extract_strided_slice %2 {offsets = [0, 0, 0], sizes = [1, 14, 32], strides = [1, 1, 1]} : vector<1x16x32xf32> to vector<1x14x32xf32>
    %9 = tpu.concatenate %7, %8 in 1 : vector<1x2x32xf32>, vector<1x14x32xf32> -> vector<1x16x32xf32>
    %10 = vector.extract_strided_slice %2 {offsets = [0, 2, 0], sizes = [1, 14, 32], strides = [1, 1, 1]} : vector<1x16x32xf32> to vector<1x14x32xf32>
    %11 = tpu.concatenate %10, %7 in 1 : vector<1x14x32xf32>, vector<1x2x32xf32> -> vector<1x16x32xf32>
    %12 = vector.shape_cast %9 : vector<1x16x32xf32> to vector<16x32xf32>
    %c0_7 = arith.constant 0 : index
    %c0_8 = arith.constant 0 : index
    %c0_9 = arith.constant 0 : index
    %c0_10 = arith.constant 0 : index
    %13 = vector.load %arg2[%c0_7, %c0_8, %c0_9, %c0_10] : memref<2x3x32x32xf32, #tpu.memory_space<vmem>>, vector<1x1x32x32xf32>
    %14 = vector.shape_cast %13 : vector<1x1x32x32xf32> to vector<32x32xf32>
    %cst_11 = arith.constant dense<0.000000e+00> : vector<16x32xf32>
    %15 = tpu.matmul %12, %14, %cst_11 {dimension_numbers = #tpu.dot_dimension_numbers<[1], [0], [0], [1], [0, 0, 1, 1], [], []>} : vector<16x32xf32>, vector<32x32xf32>, vector<16x32xf32> -> vector<16x32xf32>
    %16 = arith.addf %6, %15 : vector<16x32xf32>
    %17 = vector.shape_cast %11 : vector<1x16x32xf32> to vector<16x32xf32>
    %c0_12 = arith.constant 0 : index
    %c2 = arith.constant 2 : index
    %c0_13 = arith.constant 0 : index
    %c0_14 = arith.constant 0 : index
    %18 = vector.load %arg2[%c0_12, %c2, %c0_13, %c0_14] : memref<2x3x32x32xf32, #tpu.memory_space<vmem>>, vector<1x1x32x32xf32>
    %19 = vector.shape_cast %18 : vector<1x1x32x32xf32> to vector<32x32xf32>
    %cst_15 = arith.constant dense<0.000000e+00> : vector<16x32xf32>
    %20 = tpu.matmul %17, %19, %cst_15 {dimension_numbers = #tpu.dot_dimension_numbers<[1], [0], [0], [1], [0, 0, 1, 1], [], []>} : vector<16x32xf32>, vector<32x32xf32>, vector<16x32xf32> -> vector<16x32xf32>
    %21 = arith.addf %16, %20 : vector<16x32xf32>
    %22 = vector.shape_cast %21 : vector<16x32xf32> to vector<1x16x32xf32>
    %c0_16 = arith.constant 0 : index
    %c0_17 = arith.constant 0 : index
    %c0_18 = arith.constant 0 : index
    %23 = vector.load %arg3[%c0_16, %c0_17, %c0_18] : memref<2x1x32xf32, #tpu.memory_space<vmem>>, vector<1x1x32xf32>
    %24 = vector.shape_cast %23 : vector<1x1x32xf32> to vector<1x32xf32>
    %25 = vector.shape_cast %24 : vector<1x32xf32> to vector<1x1x32xf32>
    %26 = vector.broadcast %25 : vector<1x1x32xf32> to vector<1x16x32xf32>
    %27 = arith.addf %22, %26 : vector<1x16x32xf32>
    %cst_19 = arith.constant 0.000000e+00 : f32
    %28 = vector.broadcast %cst_19 : f32 to vector<1x16x32xf32>
    %29 = arith.maximumf %27, %28 : vector<1x16x32xf32>
    %30 = vector.shape_cast %29 : vector<1x16x32xf32> to vector<16x32xf32>
    %c0_20 = arith.constant 0 : index
    %c1_21 = arith.constant 1 : index
    %c0_22 = arith.constant 0 : index
    %c0_23 = arith.constant 0 : index
    %31 = vector.load %arg4[%c0_20, %c1_21, %c0_22, %c0_23] : memref<2x3x32x32xf32, #tpu.memory_space<vmem>>, vector<1x1x32x32xf32>
    %32 = vector.shape_cast %31 : vector<1x1x32x32xf32> to vector<32x32xf32>
    %cst_24 = arith.constant dense<0.000000e+00> : vector<16x32xf32>
    %33 = tpu.matmul %30, %32, %cst_24 {dimension_numbers = #tpu.dot_dimension_numbers<[1], [0], [0], [1], [0, 0, 1, 1], [], []>} : vector<16x32xf32>, vector<32x32xf32>, vector<16x32xf32> -> vector<16x32xf32>
    %cst_25 = arith.constant 0.000000e+00 : f32
    %34 = vector.broadcast %cst_25 : f32 to vector<1x2x32xf32>
    %35 = vector.extract_strided_slice %29 {offsets = [0, 0, 0], sizes = [1, 14, 32], strides = [1, 1, 1]} : vector<1x16x32xf32> to vector<1x14x32xf32>
    %36 = tpu.concatenate %34, %35 in 1 : vector<1x2x32xf32>, vector<1x14x32xf32> -> vector<1x16x32xf32>
    %37 = vector.extract_strided_slice %29 {offsets = [0, 2, 0], sizes = [1, 14, 32], strides = [1, 1, 1]} : vector<1x16x32xf32> to vector<1x14x32xf32>
    %38 = tpu.concatenate %37, %34 in 1 : vector<1x14x32xf32>, vector<1x2x32xf32> -> vector<1x16x32xf32>
    %39 = vector.shape_cast %36 : vector<1x16x32xf32> to vector<16x32xf32>
    %c0_26 = arith.constant 0 : index
    %c0_27 = arith.constant 0 : index
    %c0_28 = arith.constant 0 : index
    %c0_29 = arith.constant 0 : index
    %40 = vector.load %arg4[%c0_26, %c0_27, %c0_28, %c0_29] : memref<2x3x32x32xf32, #tpu.memory_space<vmem>>, vector<1x1x32x32xf32>
    %41 = vector.shape_cast %40 : vector<1x1x32x32xf32> to vector<32x32xf32>
    %cst_30 = arith.constant dense<0.000000e+00> : vector<16x32xf32>
    %42 = tpu.matmul %39, %41, %cst_30 {dimension_numbers = #tpu.dot_dimension_numbers<[1], [0], [0], [1], [0, 0, 1, 1], [], []>} : vector<16x32xf32>, vector<32x32xf32>, vector<16x32xf32> -> vector<16x32xf32>
    %43 = arith.addf %33, %42 : vector<16x32xf32>
    %44 = vector.shape_cast %38 : vector<1x16x32xf32> to vector<16x32xf32>
    %c0_31 = arith.constant 0 : index
    %c2_32 = arith.constant 2 : index
    %c0_33 = arith.constant 0 : index
    %c0_34 = arith.constant 0 : index
    %45 = vector.load %arg4[%c0_31, %c2_32, %c0_33, %c0_34] : memref<2x3x32x32xf32, #tpu.memory_space<vmem>>, vector<1x1x32x32xf32>
    %46 = vector.shape_cast %45 : vector<1x1x32x32xf32> to vector<32x32xf32>
    %cst_35 = arith.constant dense<0.000000e+00> : vector<16x32xf32>
    %47 = tpu.matmul %44, %46, %cst_35 {dimension_numbers = #tpu.dot_dimension_numbers<[1], [0], [0], [1], [0, 0, 1, 1], [], []>} : vector<16x32xf32>, vector<32x32xf32>, vector<16x32xf32> -> vector<16x32xf32>
    %48 = arith.addf %43, %47 : vector<16x32xf32>
    %49 = vector.shape_cast %48 : vector<16x32xf32> to vector<1x16x32xf32>
    %c0_36 = arith.constant 0 : index
    %c0_37 = arith.constant 0 : index
    %c0_38 = arith.constant 0 : index
    %50 = vector.load %arg5[%c0_36, %c0_37, %c0_38] : memref<2x1x32xf32, #tpu.memory_space<vmem>>, vector<1x1x32xf32>
    %51 = vector.shape_cast %50 : vector<1x1x32xf32> to vector<1x32xf32>
    %52 = vector.shape_cast %51 : vector<1x32xf32> to vector<1x1x32xf32>
    %53 = vector.broadcast %52 : vector<1x1x32xf32> to vector<1x16x32xf32>
    %54 = arith.addf %49, %53 : vector<1x16x32xf32>
    %cst_39 = arith.constant 0.000000e+00 : f32
    %55 = vector.broadcast %cst_39 : f32 to vector<1x16x32xf32>
    %56 = arith.maximumf %54, %55 : vector<1x16x32xf32>
    %57 = vector.shape_cast %56 : vector<1x16x32xf32> to vector<16x32xf32>
    %c0_40 = arith.constant 0 : index
    %c0_41 = arith.constant 0 : index
    %c0_42 = arith.constant 0 : index
    %58 = vector.load %arg6[%c0_40, %c0_41, %c0_42] : memref<2x32x32xf32, #tpu.memory_space<vmem>>, vector<1x32x32xf32>
    %59 = vector.shape_cast %58 : vector<1x32x32xf32> to vector<32x32xf32>
    %cst_43 = arith.constant dense<0.000000e+00> : vector<16x32xf32>
    %60 = tpu.matmul %57, %59, %cst_43 {dimension_numbers = #tpu.dot_dimension_numbers<[1], [0], [0], [1], [0, 0, 1, 1], [], []>} : vector<16x32xf32>, vector<32x32xf32>, vector<16x32xf32> -> vector<16x32xf32>
    %61 = vector.shape_cast %60 : vector<16x32xf32> to vector<1x16x32xf32>
    %c0_44 = arith.constant 0 : index
    %c0_45 = arith.constant 0 : index
    %c0_46 = arith.constant 0 : index
    %62 = vector.load %arg7[%c0_44, %c0_45, %c0_46] : memref<2x1x32xf32, #tpu.memory_space<vmem>>, vector<1x1x32xf32>
    %63 = vector.shape_cast %62 : vector<1x1x32xf32> to vector<1x32xf32>
    %64 = vector.shape_cast %63 : vector<1x32xf32> to vector<1x1x32xf32>
    %65 = vector.broadcast %64 : vector<1x1x32xf32> to vector<1x16x32xf32>
    %66 = arith.addf %61, %65 : vector<1x16x32xf32>
    %67 = arith.addf %0, %66 : vector<1x16x32xf32>
    %cst_47 = arith.constant 0.000000e+00 : f32
    %68 = vector.broadcast %cst_47 : f32 to vector<1x16x32xf32>
    %69 = arith.maximumf %67, %68 : vector<1x16x32xf32>
    %70 = vector.shape_cast %69 : vector<1x16x32xf32> to vector<16x32xf32>
    %c1_48 = arith.constant 1 : index
    %c1_49 = arith.constant 1 : index
    %c0_50 = arith.constant 0 : index
    %c0_51 = arith.constant 0 : index
    %71 = vector.load %arg2[%c1_48, %c1_49, %c0_50, %c0_51] : memref<2x3x32x32xf32, #tpu.memory_space<vmem>>, vector<1x1x32x32xf32>
    %72 = vector.shape_cast %71 : vector<1x1x32x32xf32> to vector<32x32xf32>
    %cst_52 = arith.constant dense<0.000000e+00> : vector<16x32xf32>
    %73 = tpu.matmul %70, %72, %cst_52 {dimension_numbers = #tpu.dot_dimension_numbers<[1], [0], [0], [1], [0, 0, 1, 1], [], []>} : vector<16x32xf32>, vector<32x32xf32>, vector<16x32xf32> -> vector<16x32xf32>
    %cst_53 = arith.constant 0.000000e+00 : f32
    %74 = vector.broadcast %cst_53 : f32 to vector<1x1x32xf32>
    %75 = vector.extract_strided_slice %69 {offsets = [0, 0, 0], sizes = [1, 15, 32], strides = [1, 1, 1]} : vector<1x16x32xf32> to vector<1x15x32xf32>
    %76 = tpu.concatenate %74, %75 in 1 : vector<1x1x32xf32>, vector<1x15x32xf32> -> vector<1x16x32xf32>
    %77 = vector.extract_strided_slice %69 {offsets = [0, 1, 0], sizes = [1, 15, 32], strides = [1, 1, 1]} : vector<1x16x32xf32> to vector<1x15x32xf32>
    %78 = tpu.concatenate %77, %74 in 1 : vector<1x15x32xf32>, vector<1x1x32xf32> -> vector<1x16x32xf32>
    %79 = vector.shape_cast %76 : vector<1x16x32xf32> to vector<16x32xf32>
    %c1_54 = arith.constant 1 : index
    %c0_55 = arith.constant 0 : index
    %c0_56 = arith.constant 0 : index
    %c0_57 = arith.constant 0 : index
    %80 = vector.load %arg2[%c1_54, %c0_55, %c0_56, %c0_57] : memref<2x3x32x32xf32, #tpu.memory_space<vmem>>, vector<1x1x32x32xf32>
    %81 = vector.shape_cast %80 : vector<1x1x32x32xf32> to vector<32x32xf32>
    %cst_58 = arith.constant dense<0.000000e+00> : vector<16x32xf32>
    %82 = tpu.matmul %79, %81, %cst_58 {dimension_numbers = #tpu.dot_dimension_numbers<[1], [0], [0], [1], [0, 0, 1, 1], [], []>} : vector<16x32xf32>, vector<32x32xf32>, vector<16x32xf32> -> vector<16x32xf32>
    %83 = arith.addf %73, %82 : vector<16x32xf32>
    %84 = vector.shape_cast %78 : vector<1x16x32xf32> to vector<16x32xf32>
    %c1_59 = arith.constant 1 : index
    %c2_60 = arith.constant 2 : index
    %c0_61 = arith.constant 0 : index
    %c0_62 = arith.constant 0 : index
    %85 = vector.load %arg2[%c1_59, %c2_60, %c0_61, %c0_62] : memref<2x3x32x32xf32, #tpu.memory_space<vmem>>, vector<1x1x32x32xf32>
    %86 = vector.shape_cast %85 : vector<1x1x32x32xf32> to vector<32x32xf32>
    %cst_63 = arith.constant dense<0.000000e+00> : vector<16x32xf32>
    %87 = tpu.matmul %84, %86, %cst_63 {dimension_numbers = #tpu.dot_dimension_numbers<[1], [0], [0], [1], [0, 0, 1, 1], [], []>} : vector<16x32xf32>, vector<32x32xf32>, vector<16x32xf32> -> vector<16x32xf32>
    %88 = arith.addf %83, %87 : vector<16x32xf32>
    %89 = vector.shape_cast %88 : vector<16x32xf32> to vector<1x16x32xf32>
    %c1_64 = arith.constant 1 : index
    %c0_65 = arith.constant 0 : index
    %c0_66 = arith.constant 0 : index
    %90 = vector.load %arg3[%c1_64, %c0_65, %c0_66] : memref<2x1x32xf32, #tpu.memory_space<vmem>>, vector<1x1x32xf32>
    %91 = vector.shape_cast %90 : vector<1x1x32xf32> to vector<1x32xf32>
    %92 = vector.shape_cast %91 : vector<1x32xf32> to vector<1x1x32xf32>
    %93 = vector.broadcast %92 : vector<1x1x32xf32> to vector<1x16x32xf32>
    %94 = arith.addf %89, %93 : vector<1x16x32xf32>
    %cst_67 = arith.constant 0.000000e+00 : f32
    %95 = vector.broadcast %cst_67 : f32 to vector<1x16x32xf32>
    %96 = arith.maximumf %94, %95 : vector<1x16x32xf32>
    %97 = vector.shape_cast %96 : vector<1x16x32xf32> to vector<16x32xf32>
    %c1_68 = arith.constant 1 : index
    %c1_69 = arith.constant 1 : index
    %c0_70 = arith.constant 0 : index
    %c0_71 = arith.constant 0 : index
    %98 = vector.load %arg4[%c1_68, %c1_69, %c0_70, %c0_71] : memref<2x3x32x32xf32, #tpu.memory_space<vmem>>, vector<1x1x32x32xf32>
    %99 = vector.shape_cast %98 : vector<1x1x32x32xf32> to vector<32x32xf32>
    %cst_72 = arith.constant dense<0.000000e+00> : vector<16x32xf32>
    %100 = tpu.matmul %97, %99, %cst_72 {dimension_numbers = #tpu.dot_dimension_numbers<[1], [0], [0], [1], [0, 0, 1, 1], [], []>} : vector<16x32xf32>, vector<32x32xf32>, vector<16x32xf32> -> vector<16x32xf32>
    %cst_73 = arith.constant 0.000000e+00 : f32
    %101 = vector.broadcast %cst_73 : f32 to vector<1x1x32xf32>
    %102 = vector.extract_strided_slice %96 {offsets = [0, 0, 0], sizes = [1, 15, 32], strides = [1, 1, 1]} : vector<1x16x32xf32> to vector<1x15x32xf32>
    %103 = tpu.concatenate %101, %102 in 1 : vector<1x1x32xf32>, vector<1x15x32xf32> -> vector<1x16x32xf32>
    %104 = vector.extract_strided_slice %96 {offsets = [0, 1, 0], sizes = [1, 15, 32], strides = [1, 1, 1]} : vector<1x16x32xf32> to vector<1x15x32xf32>
    %105 = tpu.concatenate %104, %101 in 1 : vector<1x15x32xf32>, vector<1x1x32xf32> -> vector<1x16x32xf32>
    %106 = vector.shape_cast %103 : vector<1x16x32xf32> to vector<16x32xf32>
    %c1_74 = arith.constant 1 : index
    %c0_75 = arith.constant 0 : index
    %c0_76 = arith.constant 0 : index
    %c0_77 = arith.constant 0 : index
    %107 = vector.load %arg4[%c1_74, %c0_75, %c0_76, %c0_77] : memref<2x3x32x32xf32, #tpu.memory_space<vmem>>, vector<1x1x32x32xf32>
    %108 = vector.shape_cast %107 : vector<1x1x32x32xf32> to vector<32x32xf32>
    %cst_78 = arith.constant dense<0.000000e+00> : vector<16x32xf32>
    %109 = tpu.matmul %106, %108, %cst_78 {dimension_numbers = #tpu.dot_dimension_numbers<[1], [0], [0], [1], [0, 0, 1, 1], [], []>} : vector<16x32xf32>, vector<32x32xf32>, vector<16x32xf32> -> vector<16x32xf32>
    %110 = arith.addf %100, %109 : vector<16x32xf32>
    %111 = vector.shape_cast %105 : vector<1x16x32xf32> to vector<16x32xf32>
    %c1_79 = arith.constant 1 : index
    %c2_80 = arith.constant 2 : index
    %c0_81 = arith.constant 0 : index
    %c0_82 = arith.constant 0 : index
    %112 = vector.load %arg4[%c1_79, %c2_80, %c0_81, %c0_82] : memref<2x3x32x32xf32, #tpu.memory_space<vmem>>, vector<1x1x32x32xf32>
    %113 = vector.shape_cast %112 : vector<1x1x32x32xf32> to vector<32x32xf32>
    %cst_83 = arith.constant dense<0.000000e+00> : vector<16x32xf32>
    %114 = tpu.matmul %111, %113, %cst_83 {dimension_numbers = #tpu.dot_dimension_numbers<[1], [0], [0], [1], [0, 0, 1, 1], [], []>} : vector<16x32xf32>, vector<32x32xf32>, vector<16x32xf32> -> vector<16x32xf32>
    %115 = arith.addf %110, %114 : vector<16x32xf32>
    %116 = vector.shape_cast %115 : vector<16x32xf32> to vector<1x16x32xf32>
    %c1_84 = arith.constant 1 : index
    %c0_85 = arith.constant 0 : index
    %c0_86 = arith.constant 0 : index
    %117 = vector.load %arg5[%c1_84, %c0_85, %c0_86] : memref<2x1x32xf32, #tpu.memory_space<vmem>>, vector<1x1x32xf32>
    %118 = vector.shape_cast %117 : vector<1x1x32xf32> to vector<1x32xf32>
    %119 = vector.shape_cast %118 : vector<1x32xf32> to vector<1x1x32xf32>
    %120 = vector.broadcast %119 : vector<1x1x32xf32> to vector<1x16x32xf32>
    %121 = arith.addf %116, %120 : vector<1x16x32xf32>
    %cst_87 = arith.constant 0.000000e+00 : f32
    %122 = vector.broadcast %cst_87 : f32 to vector<1x16x32xf32>
    %123 = arith.maximumf %121, %122 : vector<1x16x32xf32>
    %124 = vector.shape_cast %123 : vector<1x16x32xf32> to vector<16x32xf32>
    %c1_88 = arith.constant 1 : index
    %c0_89 = arith.constant 0 : index
    %c0_90 = arith.constant 0 : index
    %125 = vector.load %arg6[%c1_88, %c0_89, %c0_90] : memref<2x32x32xf32, #tpu.memory_space<vmem>>, vector<1x32x32xf32>
    %126 = vector.shape_cast %125 : vector<1x32x32xf32> to vector<32x32xf32>
    %cst_91 = arith.constant dense<0.000000e+00> : vector<16x32xf32>
    %127 = tpu.matmul %124, %126, %cst_91 {dimension_numbers = #tpu.dot_dimension_numbers<[1], [0], [0], [1], [0, 0, 1, 1], [], []>} : vector<16x32xf32>, vector<32x32xf32>, vector<16x32xf32> -> vector<16x32xf32>
    %128 = vector.shape_cast %127 : vector<16x32xf32> to vector<1x16x32xf32>
    %c1_92 = arith.constant 1 : index
    %c0_93 = arith.constant 0 : index
    %c0_94 = arith.constant 0 : index
    %129 = vector.load %arg7[%c1_92, %c0_93, %c0_94] : memref<2x1x32xf32, #tpu.memory_space<vmem>>, vector<1x1x32xf32>
    %130 = vector.shape_cast %129 : vector<1x1x32xf32> to vector<1x32xf32>
    %131 = vector.shape_cast %130 : vector<1x32xf32> to vector<1x1x32xf32>
    %132 = vector.broadcast %131 : vector<1x1x32xf32> to vector<1x16x32xf32>
    %133 = arith.addf %128, %132 : vector<1x16x32xf32>
    %134 = arith.addf %67, %133 : vector<1x16x32xf32>
    %c0_95 = arith.constant 0 : index
    %c0_96 = arith.constant 0 : index
    %c0_97 = arith.constant 0 : index
    %135 = vector.load %arg8[%c0_95, %c0_96, %c0_97] : memref<1x16x32xf32, #tpu.memory_space<vmem>>, vector<1x16x32xf32>
    tpu.vector_store %arg8[%c0_95, %c0_96, %c0_97], %134 {strides = array<i32>} : memref<1x16x32xf32, #tpu.memory_space<vmem>>, vector<1x16x32xf32>,
    return
  }
  func.func @transform_0(%arg0: i32) -> (i32, i32, i32) {
    %c0_i32 = arith.constant 0 : i32
    %c0_i32_0 = arith.constant 0 : i32
    %c0_i32_1 = arith.constant 0 : i32
    return %arg0, %c0_i32, %c0_i32_0 : i32, i32, i32
  }
  func.func @transform_1(%arg0: i32) -> (i32, i32, i32, i32) {
    %c0_i32 = arith.constant 0 : i32
    %c0_i32_0 = arith.constant 0 : i32
    %c0_i32_1 = arith.constant 0 : i32
    %c0_i32_2 = arith.constant 0 : i32
    %c0_i32_3 = arith.constant 0 : i32
    return %c0_i32, %c0_i32_0, %c0_i32_1, %c0_i32_2 : i32, i32, i32, i32
  }
  func.func @transform_2(%arg0: i32) -> (i32, i32, i32) {
    %c0_i32 = arith.constant 0 : i32
    %c0_i32_0 = arith.constant 0 : i32
    %c0_i32_1 = arith.constant 0 : i32
    %c0_i32_2 = arith.constant 0 : i32
    return %c0_i32, %c0_i32_0, %c0_i32_1 : i32, i32, i32
  }
  func.func @transform_3(%arg0: i32) -> (i32, i32, i32, i32) {
    %c0_i32 = arith.constant 0 : i32
    %c0_i32_0 = arith.constant 0 : i32
    %c0_i32_1 = arith.constant 0 : i32
    %c0_i32_2 = arith.constant 0 : i32
    %c0_i32_3 = arith.constant 0 : i32
    return %c0_i32, %c0_i32_0, %c0_i32_1, %c0_i32_2 : i32, i32, i32, i32
  }
  func.func @transform_4(%arg0: i32) -> (i32, i32, i32) {
    %c0_i32 = arith.constant 0 : i32
    %c0_i32_0 = arith.constant 0 : i32
    %c0_i32_1 = arith.constant 0 : i32
    %c0_i32_2 = arith.constant 0 : i32
    return %c0_i32, %c0_i32_0, %c0_i32_1 : i32, i32, i32
  }
  func.func @transform_5(%arg0: i32) -> (i32, i32, i32) {
    %c0_i32 = arith.constant 0 : i32
    %c0_i32_0 = arith.constant 0 : i32
    %c0_i32_1 = arith.constant 0 : i32
    %c0_i32_2 = arith.constant 0 : i32
    return %c0_i32, %c0_i32_0, %c0_i32_1 : i32, i32, i32
  }
  func.func @transform_6(%arg0: i32) -> (i32, i32, i32) {
    %c0_i32 = arith.constant 0 : i32
    %c0_i32_0 = arith.constant 0 : i32
    %c0_i32_1 = arith.constant 0 : i32
    %c0_i32_2 = arith.constant 0 : i32
    return %c0_i32, %c0_i32_0, %c0_i32_1 : i32, i32, i32
  }
  func.func @transform_7(%arg0: i32) -> (i32, i32, i32) {
    %c0_i32 = arith.constant 0 : i32
    %c0_i32_0 = arith.constant 0 : i32
    %c0_i32_1 = arith.constant 0 : i32
    return %arg0, %c0_i32, %c0_i32_0 : i32, i32, i32
  }
}

</mosaic_0001>

<llo_original>
// kernel: tpu_custom_call.1
$region0: #{tpu_custom_call.1}
  #allocation0 [shape = 'u32[]', space=smem, size = 0x4, offset = 0x4, fixed_abs, tag = 'smem constant byte address 0x4 - core index']
  #allocation1 [shape = 'u32[72,128]{1,0:T(1,128)}', space=vmem, size = 0x9000, scoped, tag = 'internal scratch']
  %s0 = inlined_call_operand.hbm [shape: f32[2,16,32], index: 0, kind: input, shape index: {}]
  %s1 = inlined_call_operand.hbm [shape: f32[2,3,32,32], index: 1, kind: input, shape index: {}]
  %s2 = inlined_call_operand.hbm [shape: f32[2,1,32], index: 2, kind: input, shape index: {}]
  %s3 = inlined_call_operand.hbm [shape: f32[2,3,32,32], index: 3, kind: input, shape index: {}]
  %s4 = inlined_call_operand.vmem [shape: f32[2,1,32], index: 4, kind: input, shape index: {}]
  %s5 = inlined_call_operand.hbm [shape: f32[2,32,32], index: 5, kind: input, shape index: {}]
  %s6 = inlined_call_operand.vmem [shape: f32[2,1,32], index: 6, kind: input, shape index: {}]
  %s7 = inlined_call_operand.hbm [shape: f32[2,16,32], index: 7, kind: output, shape index: {}]
  %s8 = sld [smem:[#allocation0]]
  $region81: #{tpu_custom_call.1} parent=0
    _
  %s10 = ssub.s32 1, %s8
  %s11 = scalar_select 0, %s10, %s8
  $region1: #{tpu_custom_call.1} parent=0
    #allocation2 [shape = 'u8[16384]{0}', space=vmem, size = 0x4000, scoped, tag = 'input window, operand 0']
    #allocation3 [shape = 's32[2]{0}', space=sflag, size = 0x8, scoped, tag = 'scoped memory for tpu_custom_call.1']
    #allocation4 [shape = 's32[2]{0}', space=sflag, size = 0x8, scoped, tag = 'scoped memory for tpu_custom_call.1']
    #allocation5 [shape = 'u8[98304]{0}', space=vmem, size = 0x18000, scoped, tag = 'input window, operand 1, single buffered']
    #allocation6 [shape = 's32[1]{0}', space=sflag, size = 0x4, scoped, tag = 'scoped memory for tpu_custom_call.1']
    #allocation7 [shape = 'u8[1024]{0}', space=vmem, size = 0x400, scoped, tag = 'input window, operand 2, single buffered']
    #allocation8 [shape = 'u8[98304]{0}', space=vmem, size = 0x18000, scoped, tag = 'input window, operand 3, single buffered']
    #allocation9 [shape = 's32[1]{0}', space=sflag, size = 0x4, scoped, tag = 'scoped memory for tpu_custom_call.1']
    #allocation10 [shape = 'u8[32768]{0}', space=vmem, size = 0x8000, scoped, tag = 'input window, operand 5, single buffered']
    #allocation11 [shape = 'u8[16384]{0}', space=vmem, size = 0x4000, scoped, tag = 'output window, operand 0']
    %12 = vsyncpa [#allocation3], 0
    %s13 = scalar_lea.sflag [#allocation3], 1
    %14 = vsyncpa %s13, 0
    %15 = vsyncpa [#allocation6], 0
    %16 = vsyncpa [#allocation9], 0
    %17 = vsyncpa [#allocation4], 0
    %s18 = scalar_lea.sflag [#allocation4], 1
    %19 = vsyncpa %s18, 0
    loop: start=0, step=1, limit=4
    $region2: #{tpu_custom_call.1} parent=1 // loop_pre_header
      _
    $region3: #{tpu_custom_call.1} parent=1 // loop_header
      %s21 = sphi 0, %s25
      %p22 = scmp.ge.s32.totalorder %s21, 4
      %s31 = sphi 0, %s33
      %s34 = sphi 0, %s31
      %s35 = sphi 0, %s34
      %s51 = sphi 0, %s35
      %s55 = sphi 0, %s55
      %s57 = sphi 0, %s55
      %s58 = sphi 0, %s57
      %s72 = sphi 0, %s58
      %s76 = sphi 0, %s76
      %s78 = sphi 0, %s76
      %s79 = sphi 0, %s78
      %s93 = sphi 0, %s79
      %s97 = sphi 0, %s97
      %s99 = sphi 0, %s97
      %s100 = sphi 0, %s99
      %s114 = sphi 0, %s100
      %s118 = sphi 0, %s118
      %s120 = sphi 0, %s118
      %s121 = sphi 0, %s120
      %s135 = sphi 0, %s121
      %s139 = sphi 0, %s139
      %s141 = sphi 0, %s139
      %s142 = sphi 0, %s141
      %s156 = sphi 0, %s142
      %s160 = sphi 0, %s160
      %s162 = sphi 0, %s160
      %s163 = sphi 0, %s162
      %s177 = sphi 0, %s163
      %s183 = sphi 0, %s185
      %s186 = sphi 0, %s183
      %s187 = sphi 0, %s186
      %s203 = sphi 0, %s187
    $region4: #{tpu_custom_call.1} parent=1 // loop_header_branch
      %24 = sbr.rel (%p22) target = $region8
    $region5: #{tpu_custom_call.1} parent=1 // loop_body
      %s26 = ssub.s32 %s21, 1
      %s27 = ssub.s32 %s21, 2
      %s28 = sadd.s32 %s21, 1
      %s29 = ssub.s32 %s21, %s28
      %p30 = scmp.eq.s32.totalorder %s29, 0
      %s32 = sadd.s32 %s31, 1
      %s33 = scalar_select %p30, %s31, %s32
      %p36 = pneg %p30
      %p37 = scmp.eq.s32.totalorder %s21, 1
      %p38 = por %p36, %p37
      %p39 = scmp.ne.s32.totalorder %s31, %s34
      %p40 = scmp.eq.s32.totalorder %s21, 0
      %p41 = por %p39, %p40
      %p42 = scmp.ne.s32.totalorder %s31, %s34
      %p43 = scmp.eq.s32.totalorder %s26, 1
      %p44 = por %p42, %p43
      %p45 = scmp.ne.s32.totalorder %s34, %s35
      %p46 = scmp.eq.s32.totalorder %s26, 0
      %p47 = por %p45, %p46
      %p48 = scmp.ne.s32.totalorder %s34, %s35
      %p49 = scmp.eq.s32.totalorder %s27, 1
      %p50 = por %p48, %p49
      %p52 = scmp.ne.s32.totalorder %s35, %s51
      %p53 = scmp.eq.s32.totalorder %s27, 0
      %p54 = por %p52, %p53
      %s56 = sadd.s32 %s55, 1
      %p59 = scmp.eq.s32.totalorder %s21, 1
      %p60 = scmp.ne.s32.totalorder %s55, %s57
      %p61 = scmp.eq.s32.totalorder %s21, 0
      %p62 = por %p60, %p61
      %p63 = scmp.ne.s32.totalorder %s55, %s57
      %p64 = scmp.eq.s32.totalorder %s26, 1
      %p65 = por %p63, %p64
      %p66 = scmp.ne.s32.totalorder %s57, %s58
      %p67 = scmp.eq.s32.totalorder %s26, 0
      %p68 = por %p66, %p67
      %p69 = scmp.ne.s32.totalorder %s57, %s58
      %p70 = scmp.eq.s32.totalorder %s27, 1
      %p71 = por %p69, %p70
      %p73 = scmp.ne.s32.totalorder %s58, %s72
      %p74 = scmp.eq.s32.totalorder %s27, 0
      %p75 = por %p73, %p74
      %s77 = sadd.s32 %s76, 1
      %p80 = scmp.eq.s32.totalorder %s21, 1
      %p81 = scmp.ne.s32.totalorder %s76, %s78
      %p82 = scmp.eq.s32.totalorder %s21, 0
      %p83 = por %p81, %p82
      %p84 = scmp.ne.s32.totalorder %s76, %s78
      %p85 = scmp.eq.s32.totalorder %s26, 1
      %p86 = por %p84, %p85
      %p87 = scmp.ne.s32.totalorder %s78, %s79
      %p88 = scmp.eq.s32.totalorder %s26, 0
      %p89 = por %p87, %p88
      %p90 = scmp.ne.s32.totalorder %s78, %s79
      %p91 = scmp.eq.s32.totalorder %s27, 1
      %p92 = por %p90, %p91
      %p94 = scmp.ne.s32.totalorder %s79, %s93
      %p95 = scmp.eq.s32.totalorder %s27, 0
      %p96 = por %p94, %p95
      %s98 = sadd.s32 %s97, 1
      %p101 = scmp.eq.s32.totalorder %s21, 1
      %p102 = scmp.ne.s32.totalorder %s97, %s99
      %p103 = scmp.eq.s32.totalorder %s21, 0
      %p104 = por %p102, %p103
      %p105 = scmp.ne.s32.totalorder %s97, %s99
      %p106 = scmp.eq.s32.totalorder %s26, 1
      %p107 = por %p105, %p106
      %p108 = scmp.ne.s32.totalorder %s99, %s100
      %p109 = scmp.eq.s32.totalorder %s26, 0
      %p110 = por %p108, %p109
      %p111 = scmp.ne.s32.totalorder %s99, %s100
      %p112 = scmp.eq.s32.totalorder %s27, 1
      %p113 = por %p111, %p112
      %p115 = scmp.ne.s32.totalorder %s100, %s114
      %p116 = scmp.eq.s32.totalorder %s27, 0
      %p117 = por %p115, %p116
      %s119 = sadd.s32 %s118, 1
      %p122 = scmp.eq.s32.totalorder %s21, 1
      %p123 = scmp.ne.s32.totalorder %s118, %s120
      %p124 = scmp.eq.s32.totalorder %s21, 0
      %p125 = por %p123, %p124
      %p126 = scmp.ne.s32.totalorder %s118, %s120
      %p127 = scmp.eq.s32.totalorder %s26, 1
      %p128 = por %p126, %p127
      %p129 = scmp.ne.s32.totalorder %s120, %s121
      %p130 = scmp.eq.s32.totalorder %s26, 0
      %p131 = por %p129, %p130
      %p132 = scmp.ne.s32.totalorder %s120, %s121
      %p133 = scmp.eq.s32.totalorder %s27, 1
      %p134 = por %p132, %p133
      %p136 = scmp.ne.s32.totalorder %s121, %s135
      %p137 = scmp.eq.s32.totalorder %s27, 0
      %p138 = por %p136, %p137
      %s140 = sadd.s32 %s139, 1
      %p143 = scmp.eq.s32.totalorder %s21, 1
      %p144 = scmp.ne.s32.totalorder %s139, %s141
      %p145 = scmp.eq.s32.totalorder %s21, 0
      %p146 = por %p144, %p145
      %p147 = scmp.ne.s32.totalorder %s139, %s141
      %p148 = scmp.eq.s32.totalorder %s26, 1
      %p149 = por %p147, %p148
      %p150 = scmp.ne.s32.totalorder %s141, %s142
      %p151 = scmp.eq.s32.totalorder %s26, 0
      %p152 = por %p150, %p151
      %p153 = scmp.ne.s32.totalorder %s141, %s142
      %p154 = scmp.eq.s32.totalorder %s27, 1
      %p155 = por %p153, %p154
      %p157 = scmp.ne.s32.totalorder %s142, %s156
      %p158 = scmp.eq.s32.totalorder %s27, 0
      %p159 = por %p157, %p158
      %s161 = sadd.s32 %s160, 1
      %p164 = scmp.eq.s32.totalorder %s21, 1
      %p165 = scmp.ne.s32.totalorder %s160, %s162
      %p166 = scmp.eq.s32.totalorder %s21, 0
      %p167 = por %p165, %p166
      %p168 = scmp.ne.s32.totalorder %s160, %s162
      %p169 = scmp.eq.s32.totalorder %s26, 1
      %p170 = por %p168, %p169
      %p171 = scmp.ne.s32.totalorder %s162, %s163
      %p172 = scmp.eq.s32.totalorder %s26, 0
      %p173 = por %p171, %p172
      %p174 = scmp.ne.s32.totalorder %s162, %s163
      %p175 = scmp.eq.s32.totalorder %s27, 1
      %p176 = por %p174, %p175
      %p178 = scmp.ne.s32.totalorder %s163, %s177
      %p179 = scmp.eq.s32.totalorder %s27, 0
      %p180 = por %p178, %p179
      %s181 = ssub.s32 %s21, %s28
      %p182 = scmp.eq.s32.totalorder %s181, 0
      %s184 = sadd.s32 %s183, 1
      %s185 = scalar_select %p182, %s183, %s184
      %p188 = pneg %p182
      %p189 = scmp.eq.s32.totalorder %s21, 1
      %p190 = por %p188, %p189
      %p191 = scmp.ne.s32.totalorder %s183, %s186
      %p192 = scmp.eq.s32.totalorder %s21, 0
      %p193 = por %p191, %p192
      %p194 = scmp.ne.s32.totalorder %s183, %s186
      %p195 = scmp.eq.s32.totalorder %s26, 1
      %p196 = por %p194, %p195
      %p197 = scmp.ne.s32.totalorder %s186, %s187
      %p198 = scmp.eq.s32.totalorder %s26, 0
      %p199 = por %p197, %p198
      %p200 = scmp.ne.s32.totalorder %s186, %s187
      %p201 = scmp.eq.s32.totalorder %s27, 1
      %p202 = por %p200, %p201
      %p204 = scmp.ne.s32.totalorder %s187, %s203
      %p205 = scmp.eq.s32.totalorder %s27, 0
      %p206 = por %p204, %p205
      %p207 = scmp.le.s32.totalorder 1, %s21
      %p208 = scmp.lt.s32.totalorder %s21, 3
      %p209 = pnand %p207, %p208
      %p210 = pneg %p209
      // Predicated region
      $region9: #{tpu_custom_call.1} parent=5 // pred_check
        _
      $region10: #{tpu_custom_call.1} parent=5 // pred_check_branch
        %212 = sbr.rel (%p209) target = $region12
      $region11: #{tpu_custom_call.1} parent=5 // pred_region
        %s213 = ssub.s32 %s21, 1
        // Predicated region
        $region13: #{tpu_custom_call.1} parent=11 // pred_check
          %p214 = pneg %p68
        $region14: #{tpu_custom_call.1} parent=11 // pred_check_branch
          %216 = sbr.rel (%p214) target = $region16
        $region15: #{tpu_custom_call.1} parent=11 // pred_region
          %218 = vsyncadd [#allocation6], 0
          %s219 = sshll.u32 %s1, 4
          %s220 = int_to_ptr.hbm [resolvable:$true] %s219
          %s221 = sshll.u32 [#allocation5], 4
          %s222 = int_to_ptr.vmem [resolvable:$true] %s221
          %227 = dma.hbm_to_vmem [thread:$0]  %s220, 3072, %s222, [#allocation6], 128, 128, 8
        $region16: #{tpu_custom_call.1} parent=11 // pred_fallthru
          _
        // Predicated region
        $region17: #{tpu_custom_call.1} parent=11 // pred_check
          %p228 = pneg %p89
        $region18: #{tpu_custom_call.1} parent=11 // pred_check_branch
          %230 = sbr.rel (%p228) target = $region20
        $region19: #{tpu_custom_call.1} parent=11 // pred_region
          %232 = vsyncadd [#allocation6], 0
          %s233 = sshll.u32 %s2, 4
          %s234 = int_to_ptr.hbm [resolvable:$true] %s233
          %s235 = sshll.u32 [#allocation7], 4
          %s236 = int_to_ptr.vmem [resolvable:$true] %s235
          %241 = dma.hbm_to_vmem [thread:$0]  %s234, 32, %s236, [#allocation6], 16, 16, 1
        $region20: #{tpu_custom_call.1} parent=11 // pred_fallthru
          _
        // Predicated region
        $region21: #{tpu_custom_call.1} parent=11 // pred_check
          %p242 = pneg %p110
        $region22: #{tpu_custom_call.1} parent=11 // pred_check_branch
          %244 = sbr.rel (%p242) target = $region24
        $region23: #{tpu_custom_call.1} parent=11 // pred_region
          %246 = vsyncadd [#allocation9], 0
          %s247 = sshll.u32 %s3, 4
          %s248 = int_to_ptr.hbm [resolvable:$true] %s247
          %s249 = sshll.u32 [#allocation8], 4
          %s250 = int_to_ptr.vmem [resolvable:$true] %s249
          %255 = dma.hbm_to_vmem [thread:$0]  %s248, 3072, %s250, [#allocation9], 128, 128, 8
        $region24: #{tpu_custom_call.1} parent=11 // pred_fallthru
          _
        // Predicated region
        $region25: #{tpu_custom_call.1} parent=11 // pred_check
          %p256 = pneg %p131
        $region26: #{tpu_custom_call.1} parent=11 // pred_check_branch
          %258 = sbr.rel (%p256) target = $region28
        $region27: #{tpu_custom_call.1} parent=11 // pred_region
          _
        $region28: #{tpu_custom_call.1} parent=11 // pred_fallthru
          _
        // Predicated region
        $region29: #{tpu_custom_call.1} parent=11 // pred_check
          %p259 = pneg %p152
        $region30: #{tpu_custom_call.1} parent=11 // pred_check_branch
          %261 = sbr.rel (%p259) target = $region32
        $region31: #{tpu_custom_call.1} parent=11 // pred_region
          %263 = vsyncadd [#allocation9], 0
          %s264 = sshll.u32 %s5, 4
          %s265 = int_to_ptr.hbm [resolvable:$true] %s264
          %s266 = sshll.u32 [#allocation10], 4
          %s267 = int_to_ptr.vmem [resolvable:$true] %s266
          %272 = dma.hbm_to_vmem [thread:$0]  %s265, 1024, %s267, [#allocation9], 128, 128, 8
        $region32: #{tpu_custom_call.1} parent=11 // pred_fallthru
          _
        // Predicated region
        $region33: #{tpu_custom_call.1} parent=11 // pred_check
          %p273 = pneg %p173
        $region34: #{tpu_custom_call.1} parent=11 // pred_check_branch
          %275 = sbr.rel (%p273) target = $region36
        $region35: #{tpu_custom_call.1} parent=11 // pred_region
          _
        $region36: #{tpu_custom_call.1} parent=11 // pred_fallthru
          _
      $region12: #{tpu_custom_call.1} parent=5 // pred_fallthru
        _
      %p276 = scmp.lt.s32.totalorder %s21, 2
      // Predicated region
      $region37: #{tpu_custom_call.1} parent=5 // pred_check
        %p277 = pneg %p276
      $region38: #{tpu_custom_call.1} parent=5 // pred_check_branch
        %279 = sbr.rel (%p277) target = $region40
      $region39: #{tpu_custom_call.1} parent=5 // pred_region
        // Predicated region
        $region41: #{tpu_custom_call.1} parent=39 // pred_check
          %p280 = pneg %p41
        $region42: #{tpu_custom_call.1} parent=39 // pred_check_branch
          %282 = sbr.rel (%p280) target = $region44
        $region43: #{tpu_custom_call.1} parent=39 // pred_region
          %s283 = sand.u32 %s31, 1
          %s284 = scalar_lea.sflag [#allocation3], %s283
          %s285 = sand.u32 %s31, 1
          %s286 = smul.addr %s285, 16
          %s287 = scalar_lea.vmem [#allocation2], %s286
          %289 = vsyncadd %s284, 0
          %s290 = smul.addr %s21, 2
          %s291 = smul.addr %s290, 8
          %s292 = scalar_lea.hbm %s0, %s291
          %s293 = sshll.u32 %s292, 4
          %s294 = int_to_ptr.hbm [resolvable:$true] %s293
          %s295 = sshll.u32 %s287, 4
          %s296 = int_to_ptr.vmem [resolvable:$true] %s295
          %301 = dma.hbm_to_vmem [thread:$0]  %s294, 256, %s296, %s284, 128, 128, 8
        $region44: #{tpu_custom_call.1} parent=39 // pred_fallthru
          _
      $region40: #{tpu_custom_call.1} parent=5 // pred_fallthru
        _
      %p302 = scmp.le.s32.totalorder 1, %s21
      %p303 = scmp.lt.s32.totalorder %s21, 3
      %p304 = pnand %p302, %p303
      %p305 = pneg %p304
      // Predicated region
      $region45: #{tpu_custom_call.1} parent=5 // pred_check
        _
      $region46: #{tpu_custom_call.1} parent=5 // pred_check_branch
        %307 = sbr.rel (%p304) target = $region48
      $region47: #{tpu_custom_call.1} parent=5 // pred_region
        %s308 = ssub.s32 %s21, 1
        %s309 = sand.u32 %s34, 1
        %s310 = scalar_lea.sflag [#allocation3], %s309
        %s311 = sand.u32 %s34, 1
        %s312 = smul.addr %s311, 16
        %s313 = scalar_lea.vmem [#allocation2], %s312
        // Predicated region
        $region49: #{tpu_custom_call.1} parent=47 // pred_check
          %p314 = pneg %p47
        $region50: #{tpu_custom_call.1} parent=47 // pred_check_branch
          %316 = sbr.rel (%p314) target = $region52
        $region51: #{tpu_custom_call.1} parent=47 // pred_region
          %318 = dma.done %s310, 256
        $region52: #{tpu_custom_call.1} parent=47 // pred_fallthru
          _
        // Predicated region
        $region53: #{tpu_custom_call.1} parent=47 // pred_check
          %p319 = pneg %p68
        $region54: #{tpu_custom_call.1} parent=47 // pred_check_branch
          %321 = sbr.rel (%p319) target = $region56
        $region55: #{tpu_custom_call.1} parent=47 // pred_region
          %323 = dma.done [#allocation6], 3072
        $region56: #{tpu_custom_call.1} parent=47 // pred_fallthru
          _
        // Predicated region
        $region57: #{tpu_custom_call.1} parent=47 // pred_check
          %p324 = pneg %p89
        $region58: #{tpu_custom_call.1} parent=47 // pred_check_branch
          %326 = sbr.rel (%p324) target = $region60
        $region59: #{tpu_custom_call.1} parent=47 // pred_region
          %328 = dma.done [#allocation6], 32
        $region60: #{tpu_custom_call.1} parent=47 // pred_fallthru
          _
        // Predicated region
        $region61: #{tpu_custom_call.1} parent=47 // pred_check
          %p329 = pneg %p110
        $region62: #{tpu_custom_call.1} parent=47 // pred_check_branch
          %331 = sbr.rel (%p329) target = $region64
        $region63: #{tpu_custom_call.1} parent=47 // pred_region
          %333 = dma.done [#allocation9], 3072
        $region64: #{tpu_custom_call.1} parent=47 // pred_fallthru
          _
        // Predicated region
        $region65: #{tpu_custom_call.1} parent=47 // pred_check
          %p334 = pneg %p152
        $region66: #{tpu_custom_call.1} parent=47 // pred_check_branch
          %336 = sbr.rel (%p334) target = $region68
        $region67: #{tpu_custom_call.1} parent=47 // pred_region
          %338 = dma.done [#allocation9], 1024
        $region68: #{tpu_custom_call.1} parent=47 // pred_fallthru
          _
        %s339 = sand.u32 %s34, 1
        %s340 = scalar_lea.sflag [#allocation3], %s339
        %s341 = sand.u32 %s34, 1
        %s342 = smul.addr %s341, 16
        %s343 = scalar_lea.vmem [#allocation2], %s342
        %p344 = pneg %p47
        %p345 = pneg %p44
        %p346 = pneg %p68
        %p347 = pneg %p65
        %p348 = pneg %p89
        %p349 = pneg %p86
        %p350 = pneg %p110
        %p351 = pneg %p107
        %p352 = pneg %p131
        %p353 = pneg %p128
        %p354 = pneg %p152
        %p355 = pneg %p149
        %p356 = pneg %p173
        %p357 = pneg %p170
        %p358 = pneg %p199
        %p359 = pneg %p196
        %s360 = sand.u32 %s186, 1
        %s361 = scalar_lea.sflag [#allocation4], %s360
        %s362 = sand.u32 %s186, 1
        %s363 = smul.addr %s362, 16
        %s364 = scalar_lea.vmem [#allocation11], %s363
        %v365 = vld [vmem:[%s313] sm:$0xff]
        %v366 = vld [vmem:[%s313 + $0x8] sm:$0xff]
        %v367 = vmax.f32 %v365, 0.0
        %v368 = vmax.f32 %v366, 0.0
        %s369 = scalar_lea.vmem [#allocation5], 32
        %v370 = vld [vmem:[%s369] sm:$0xff]
        %v371 = vld [vmem:[%s369 + $0x8] sm:$0xff]
        %v372 = vld [vmem:[%s369 + $0x10] sm:$0xff]
        %v373 = vld [vmem:[%s369 + $0x18] sm:$0xff]
        %vm376 = vcmask 1041408
        %v377 = vrot.slane %v367, 6
        %v378 = vrot.slane %v368, 6
        %v379 = vsel %vm376, %v377, %v378
        %v381 = vsel %vm376, 0.0, %v377
        %vm382 = vcmask 1045504
        %v383 = vrot.slane %v367, 2
        %v384 = vrot.slane %v368, 2
        %v385 = vsel %vm382, %v383, %v384
        %v387 = vsel %vm382, %v384, 0.0
        %v388 = vld [vmem:[#allocation5] sm:$0xff]
        %v389 = vld [vmem:[#allocation5 + $0x8] sm:$0xff]
        %v390 = vld [vmem:[#allocation5 + $0x10] sm:$0xff]
        %v391 = vld [vmem:[#allocation5 + $0x18] sm:$0xff]
        %vm392 = vcmask 261120
        %v394 = vsel %vm392, %v381, 0
        %v396 = vsel %vm392, %v379, 0
        %398 = vmatpush.msra.mxu0 0.0
        %399 = vmatpush.msra.mxu0 0.0
        %400 = vmatpush.msra.mxu0 0.0
        %401 = vmatpush.msra.mxu0 0.0
        %402 = vmatpush.msra.mxu0 0.0
        %403 = vmatpush.msra.mxu0 0.0
        %404 = vmatpush.msra.mxu0 0.0
        %405 = vmatpush.msra.mxu0 0.0
        %406 = vmatpush.msra.mxu0 0.0
        %407 = vmatpush.msra.mxu0 0.0
        %408 = vmatpush.msra.mxu0 0.0
        %409 = vmatpush.msra.mxu0 0.0
        %410 = vmatpush.msra.mxu0 %v391
        %411 = vmatpush.msra.mxu0 %v390
        %412 = vmatpush.msra.mxu0 %v389
        %413 = vmatpush.msra.mxu0 %v388
        %414 = vmatmul.f32.gmra.mxu0 %v394
        %v415 = vpop.f32.mrf.mxu0
        %v416 = vadd.f32 0.0, %v415
        %417 = vmatmul.f32.gmra.mxu0 %v396
        %v418 = vpop.f32.mrf.mxu0
        %v419 = vadd.f32 0.0, %v418
        %420 = vdwg.mxu0
        %v421 = vsel %vm392, %v367, 0
        %v423 = vsel %vm392, %v368, 0
        %425 = vmatpush.msra.mxu0 0.0
        %426 = vmatpush.msra.mxu0 0.0
        %427 = vmatpush.msra.mxu0 0.0
        %428 = vmatpush.msra.mxu0 0.0
        %429 = vmatpush.msra.mxu0 0.0
        %430 = vmatpush.msra.mxu0 0.0
        %431 = vmatpush.msra.mxu0 0.0
        %432 = vmatpush.msra.mxu0 0.0
        %433 = vmatpush.msra.mxu0 0.0
        %434 = vmatpush.msra.mxu0 0.0
        %435 = vmatpush.msra.mxu0 0.0
        %436 = vmatpush.msra.mxu0 0.0
        %437 = vmatpush.msra.mxu0 %v373
        %438 = vmatpush.msra.mxu0 %v372
        %439 = vmatpush.msra.mxu0 %v371
        %440 = vmatpush.msra.mxu0 %v370
        %441 = vmatmul.f32.gmra.mxu0 %v421
        %v442 = vpop.f32.mrf.mxu0
        %v443 = vadd.f32 %v416, %v442
        %444 = vmatmul.f32.gmra.mxu0 %v423
        %v445 = vpop.f32.mrf.mxu0
        %v446 = vadd.f32 %v419, %v445
        %447 = vdwg.mxu0
        %s448 = scalar_lea.vmem [#allocation5], 64
        %v449 = vld [vmem:[%s448] sm:$0xff]
        %v450 = vld [vmem:[%s448 + $0x8] sm:$0xff]
        %v451 = vld [vmem:[%s448 + $0x10] sm:$0xff]
        %v452 = vld [vmem:[%s448 + $0x18] sm:$0xff]
        %v453 = vsel %vm392, %v385, 0
        %v456 = vsel %vm392, %v387, 0
        %458 = vmatpush.msra.mxu0 0.0
        %459 = vmatpush.msra.mxu0 0.0
        %460 = vmatpush.msra.mxu0 0.0
        %461 = vmatpush.msra.mxu0 0.0
        %462 = vmatpush.msra.mxu0 0.0
        %463 = vmatpush.msra.mxu0 0.0
        %464 = vmatpush.msra.mxu0 0.0
        %465 = vmatpush.msra.mxu0 0.0
        %466 = vmatpush.msra.mxu0 0.0
        %467 = vmatpush.msra.mxu0 0.0
        %468 = vmatpush.msra.mxu0 0.0
        %469 = vmatpush.msra.mxu0 0.0
        %470 = vmatpush.msra.mxu0 %v452
        %471 = vmatpush.msra.mxu0 %v451
        %472 = vmatpush.msra.mxu0 %v450
        %473 = vmatpush.msra.mxu0 %v449
        %474 = vmatmul.f32.gmra.mxu0 %v453
        %v475 = vpop.f32.mrf.mxu0
        %v476 = vadd.f32 0.0, %v475
        %477 = vmatmul.f32.gmra.mxu0 %v456
        %v478 = vpop.f32.mrf.mxu0
        %v479 = vadd.f32 0.0, %v478
        %480 = vdwg.mxu0
        %v481 = vadd.f32 %v443, %v476
        %v482 = vadd.f32 %v446, %v479
        %v483 = vld [vmem:[#allocation7] sm:$0x1]
        %v485 = vperm.slane %v483, 0
        %v487 = vadd.f32 %v481, %v485
        %v488 = vadd.f32 %v482, %v485
        %v489 = vmax.f32 %v487, 0.0
        %v490 = vmax.f32 %v488, 0.0
        %s491 = scalar_lea.vmem [#allocation8], 32
        %v492 = vld [vmem:[%s491] sm:$0xff]
        %v493 = vld [vmem:[%s491 + $0x8] sm:$0xff]
        %v494 = vld [vmem:[%s491 + $0x10] sm:$0xff]
        %v495 = vld [vmem:[%s491 + $0x18] sm:$0xff]
        %v498 = vrot.slane %v489, 6
        %v499 = vrot.slane %v490, 6
        %v500 = vsel %vm376, %v498, %v499
        %v502 = vsel %vm376, 0.0, %v498
        %v503 = vrot.slane %v489, 2
        %v504 = vrot.slane %v490, 2
        %v505 = vsel %vm382, %v503, %v504
        %v507 = vsel %vm382, %v504, 0.0
        %v508 = vld [vmem:[#allocation8] sm:$0xff]
        %v509 = vld [vmem:[#allocation8 + $0x8] sm:$0xff]
        %v510 = vld [vmem:[#allocation8 + $0x10] sm:$0xff]
        %v511 = vld [vmem:[#allocation8 + $0x18] sm:$0xff]
        %v513 = vsel %vm392, %v502, 0
        %v515 = vsel %vm392, %v500, 0
        %517 = vmatpush.msra.mxu0 0.0
        %518 = vmatpush.msra.mxu0 0.0
        %519 = vmatpush.msra.mxu0 0.0
        %520 = vmatpush.msra.mxu0 0.0
        %521 = vmatpush.msra.mxu0 0.0
        %522 = vmatpush.msra.mxu0 0.0
        %523 = vmatpush.msra.mxu0 0.0
        %524 = vmatpush.msra.mxu0 0.0
        %525 = vmatpush.msra.mxu0 0.0
        %526 = vmatpush.msra.mxu0 0.0
        %527 = vmatpush.msra.mxu0 0.0
        %528 = vmatpush.msra.mxu0 0.0
        %529 = vmatpush.msra.mxu0 %v511
        %530 = vmatpush.msra.mxu0 %v510
        %531 = vmatpush.msra.mxu0 %v509
        %532 = vmatpush.msra.mxu0 %v508
        %533 = vmatmul.f32.gmra.mxu0 %v513
        %v534 = vpop.f32.mrf.mxu0
        %v535 = vadd.f32 0.0, %v534
        %536 = vmatmul.f32.gmra.mxu0 %v515
        %v537 = vpop.f32.mrf.mxu0
        %v538 = vadd.f32 0.0, %v537
        %539 = vdwg.mxu0
        %v540 = vsel %vm392, %v489, 0
        %v542 = vsel %vm392, %v490, 0
        %544 = vmatpush.msra.mxu0 0.0
        %545 = vmatpush.msra.mxu0 0.0
        %546 = vmatpush.msra.mxu0 0.0
        %547 = vmatpush.msra.mxu0 0.0
        %548 = vmatpush.msra.mxu0 0.0
        %549 = vmatpush.msra.mxu0 0.0
        %550 = vmatpush.msra.mxu0 0.0
        %551 = vmatpush.msra.mxu0 0.0
        %552 = vmatpush.msra.mxu0 0.0
        %553 = vmatpush.msra.mxu0 0.0
        %554 = vmatpush.msra.mxu0 0.0
        %555 = vmatpush.msra.mxu0 0.0
        %556 = vmatpush.msra.mxu0 %v495
        %557 = vmatpush.msra.mxu0 %v494
        %558 = vmatpush.msra.mxu0 %v493
        %559 = vmatpush.msra.mxu0 %v492
        %560 = vmatmul.f32.gmra.mxu0 %v540
        %v561 = vpop.f32.mrf.mxu0
        %v562 = vadd.f32 %v535, %v561
        %563 = vmatmul.f32.gmra.mxu0 %v542
        %v564 = vpop.f32.mrf.mxu0
        %v565 = vadd.f32 %v538, %v564
        %566 = vdwg.mxu0
        %s567 = scalar_lea.vmem [#allocation8], 64
        %v568 = vld [vmem:[%s567] sm:$0xff]
        %v569 = vld [vmem:[%s567 + $0x8] sm:$0xff]
        %v570 = vld [vmem:[%s567 + $0x10] sm:$0xff]
        %v571 = vld [vmem:[%s567 + $0x18] sm:$0xff]
        %v572 = vsel %vm392, %v505, 0
        %v575 = vsel %vm392, %v507, 0
        %577 = vmatpush.msra.mxu0 0.0
        %578 = vmatpush.msra.mxu0 0.0
        %579 = vmatpush.msra.mxu0 0.0
        %580 = vmatpush.msra.mxu0 0.0
        %581 = vmatpush.msra.mxu0 0.0
        %582 = vmatpush.msra.mxu0 0.0
        %583 = vmatpush.msra.mxu0 0.0
        %584 = vmatpush.msra.mxu0 0.0
        %585 = vmatpush.msra.mxu0 0.0
        %586 = vmatpush.msra.mxu0 0.0
        %587 = vmatpush.msra.mxu0 0.0
        %588 = vmatpush.msra.mxu0 0.0
        %589 = vmatpush.msra.mxu0 %v571
        %590 = vmatpush.msra.mxu0 %v570
        %591 = vmatpush.msra.mxu0 %v569
        %592 = vmatpush.msra.mxu0 %v568
        %593 = vmatmul.f32.gmra.mxu0 %v572
        %v594 = vpop.f32.mrf.mxu0
        %v595 = vadd.f32 0.0, %v594
        %596 = vmatmul.f32.gmra.mxu0 %v575
        %v597 = vpop.f32.mrf.mxu0
        %v598 = vadd.f32 0.0, %v597
        %599 = vdwg.mxu0
        %v600 = vadd.f32 %v562, %v595
        %v601 = vadd.f32 %v565, %v598
        %v602 = vld [vmem:[%s4] sm:$0x1]
        %v604 = vperm.slane %v602, 0
        %v606 = vadd.f32 %v600, %v604
        %v607 = vadd.f32 %v601, %v604
        %v608 = vmax.f32 %v606, 0.0
        %v609 = vmax.f32 %v607, 0.0
        %v610 = vld [vmem:[#allocation10] sm:$0xff]
        %v611 = vld [vmem:[#allocation10 + $0x8] sm:$0xff]
        %v612 = vld [vmem:[#allocation10 + $0x10] sm:$0xff]
        %v613 = vld [vmem:[#allocation10 + $0x18] sm:$0xff]
        %v615 = vsel %vm392, %v608, 0
        %v618 = vsel %vm392, %v609, 0
        %620 = vmatpush.msra.mxu0 0.0
        %621 = vmatpush.msra.mxu0 0.0
        %622 = vmatpush.msra.mxu0 0.0
        %623 = vmatpush.msra.mxu0 0.0
        %624 = vmatpush.msra.mxu0 0.0
        %625 = vmatpush.msra.mxu0 0.0
        %626 = vmatpush.msra.mxu0 0.0
        %627 = vmatpush.msra.mxu0 0.0
        %628 = vmatpush.msra.mxu0 0.0
        %629 = vmatpush.msra.mxu0 0.0
        %630 = vmatpush.msra.mxu0 0.0
        %631 = vmatpush.msra.mxu0 0.0
        %632 = vmatpush.msra.mxu0 %v613
        %633 = vmatpush.msra.mxu0 %v612
        %634 = vmatpush.msra.mxu0 %v611
        %635 = vmatpush.msra.mxu0 %v610
        %636 = vmatmul.f32.gmra.mxu0 %v615
        %v637 = vpop.f32.mrf.mxu0
        %v638 = vadd.f32 0.0, %v637
        %639 = vmatmul.f32.gmra.mxu0 %v618
        %v640 = vpop.f32.mrf.mxu0
        %v641 = vadd.f32 0.0, %v640
        %642 = vdwg.mxu0
        %v643 = vld [vmem:[%s6] sm:$0x1]
        %v645 = vperm.slane %v643, 0
        %v647 = vadd.f32 %v638, %v645
        %v648 = vadd.f32 %v641, %v645
        %v649 = vadd.f32 %v365, %v647
        %v650 = vadd.f32 %v366, %v648
        %v651 = vmax.f32 %v649, 0.0
        %v652 = vmax.f32 %v650, 0.0
        %s653 = scalar_lea.vmem [#allocation5], 128
        %v654 = vld [vmem:[%s653] sm:$0xff]
        %v655 = vld [vmem:[%s653 + $0x8] sm:$0xff]
        %v656 = vld [vmem:[%s653 + $0x10] sm:$0xff]
        %v657 = vld [vmem:[%s653 + $0x18] sm:$0xff]
        %vm660 = vcmask 1040384
        %v661 = vrot.slane %v651, 7
        %v662 = vrot.slane %v652, 7
        %v663 = vsel %vm660, %v661, %v662
        %v665 = vsel %vm660, 0.0, %v661
        %vm666 = vcmask 1046528
        %v667 = vrot.slane %v651, 1
        %v668 = vrot.slane %v652, 1
        %v669 = vsel %vm666, %v667, %v668
        %v671 = vsel %vm666, %v668, 0.0
        %s672 = scalar_lea.vmem [#allocation5], 96
        %v673 = vld [vmem:[%s672] sm:$0xff]
        %v674 = vld [vmem:[%s672 + $0x8] sm:$0xff]
        %v675 = vld [vmem:[%s672 + $0x10] sm:$0xff]
        %v676 = vld [vmem:[%s672 + $0x18] sm:$0xff]
        %v678 = vsel %vm392, %v665, 0
        %v680 = vsel %vm392, %v663, 0
        %682 = vmatpush.msra.mxu0 0.0
        %683 = vmatpush.msra.mxu0 0.0
        %684 = vmatpush.msra.mxu0 0.0
        %685 = vmatpush.msra.mxu0 0.0
        %686 = vmatpush.msra.mxu0 0.0
        %687 = vmatpush.msra.mxu0 0.0
        %688 = vmatpush.msra.mxu0 0.0
        %689 = vmatpush.msra.mxu0 0.0
        %690 = vmatpush.msra.mxu0 0.0
        %691 = vmatpush.msra.mxu0 0.0
        %692 = vmatpush.msra.mxu0 0.0
        %693 = vmatpush.msra.mxu0 0.0
        %694 = vmatpush.msra.mxu0 %v676
        %695 = vmatpush.msra.mxu0 %v675
        %696 = vmatpush.msra.mxu0 %v674
        %697 = vmatpush.msra.mxu0 %v673
        %698 = vmatmul.f32.gmra.mxu0 %v678
        %v699 = vpop.f32.mrf.mxu0
        %v700 = vadd.f32 0.0, %v699
        %701 = vmatmul.f32.gmra.mxu0 %v680
        %v702 = vpop.f32.mrf.mxu0
        %v703 = vadd.f32 0.0, %v702
        %704 = vdwg.mxu0
        %v705 = vsel %vm392, %v651, 0
        %v707 = vsel %vm392, %v652, 0
        %709 = vmatpush.msra.mxu0 0.0
        %710 = vmatpush.msra.mxu0 0.0
        %711 = vmatpush.msra.mxu0 0.0
        %712 = vmatpush.msra.mxu0 0.0
        %713 = vmatpush.msra.mxu0 0.0
        %714 = vmatpush.msra.mxu0 0.0
        %715 = vmatpush.msra.mxu0 0.0
        %716 = vmatpush.msra.mxu0 0.0
        %717 = vmatpush.msra.mxu0 0.0
        %718 = vmatpush.msra.mxu0 0.0
        %719 = vmatpush.msra.mxu0 0.0
        %720 = vmatpush.msra.mxu0 0.0
        %721 = vmatpush.msra.mxu0 %v657
        %722 = vmatpush.msra.mxu0 %v656
        %723 = vmatpush.msra.mxu0 %v655
        %724 = vmatpush.msra.mxu0 %v654
        %725 = vmatmul.f32.gmra.mxu0 %v705
        %v726 = vpop.f32.mrf.mxu0
        %v727 = vadd.f32 %v700, %v726
        %728 = vmatmul.f32.gmra.mxu0 %v707
        %v729 = vpop.f32.mrf.mxu0
        %v730 = vadd.f32 %v703, %v729
        %731 = vdwg.mxu0
        %s732 = scalar_lea.vmem [#allocation5], 160
        %v733 = vld [vmem:[%s732] sm:$0xff]
        %v734 = vld [vmem:[%s732 + $0x8] sm:$0xff]
        %v735 = vld [vmem:[%s732 + $0x10] sm:$0xff]
        %v736 = vld [vmem:[%s732 + $0x18] sm:$0xff]
        %v737 = vsel %vm392, %v669, 0
        %v740 = vsel %vm392, %v671, 0
        %742 = vmatpush.msra.mxu0 0.0
        %743 = vmatpush.msra.mxu0 0.0
        %744 = vmatpush.msra.mxu0 0.0
        %745 = vmatpush.msra.mxu0 0.0
        %746 = vmatpush.msra.mxu0 0.0
        %747 = vmatpush.msra.mxu0 0.0
        %748 = vmatpush.msra.mxu0 0.0
        %749 = vmatpush.msra.mxu0 0.0
        %750 = vmatpush.msra.mxu0 0.0
        %751 = vmatpush.msra.mxu0 0.0
        %752 = vmatpush.msra.mxu0 0.0
        %753 = vmatpush.msra.mxu0 0.0
        %754 = vmatpush.msra.mxu0 %v736
        %755 = vmatpush.msra.mxu0 %v735
        %756 = vmatpush.msra.mxu0 %v734
        %757 = vmatpush.msra.mxu0 %v733
        %758 = vmatmul.f32.gmra.mxu0 %v737
        %v759 = vpop.f32.mrf.mxu0
        %v760 = vadd.f32 0.0, %v759
        %761 = vmatmul.f32.gmra.mxu0 %v740
        %v762 = vpop.f32.mrf.mxu0
        %v763 = vadd.f32 0.0, %v762
        %764 = vdwg.mxu0
        %v765 = vadd.f32 %v727, %v760
        %v766 = vadd.f32 %v730, %v763
        %s767 = scalar_lea.vmem [#allocation7], 1
        %v768 = vld [vmem:[%s767] sm:$0x1]
        %v770 = vperm.slane %v768, 0
        %v772 = vadd.f32 %v765, %v770
        %v773 = vadd.f32 %v766, %v770
        %v774 = vmax.f32 %v772, 0.0
        %v775 = vmax.f32 %v773, 0.0
        %s776 = scalar_lea.vmem [#allocation8], 128
        %v777 = vld [vmem:[%s776] sm:$0xff]
        %v778 = vld [vmem:[%s776 + $0x8] sm:$0xff]
        %v779 = vld [vmem:[%s776 + $0x10] sm:$0xff]
        %v780 = vld [vmem:[%s776 + $0x18] sm:$0xff]
        %v783 = vrot.slane %v774, 7
        %v784 = vrot.slane %v775, 7
        %v785 = vsel %vm660, %v783, %v784
        %v787 = vsel %vm660, 0.0, %v783
        %v788 = vrot.slane %v774, 1
        %v789 = vrot.slane %v775, 1
        %v790 = vsel %vm666, %v788, %v789
        %v792 = vsel %vm666, %v789, 0.0
        %s793 = scalar_lea.vmem [#allocation8], 96
        %v794 = vld [vmem:[%s793] sm:$0xff]
        %v795 = vld [vmem:[%s793 + $0x8] sm:$0xff]
        %v796 = vld [vmem:[%s793 + $0x10] sm:$0xff]
        %v797 = vld [vmem:[%s793 + $0x18] sm:$0xff]
        %v799 = vsel %vm392, %v787, 0
        %v801 = vsel %vm392, %v785, 0
        %803 = vmatpush.msra.mxu0 0.0
        %804 = vmatpush.msra.mxu0 0.0
        %805 = vmatpush.msra.mxu0 0.0
        %806 = vmatpush.msra.mxu0 0.0
        %807 = vmatpush.msra.mxu0 0.0
        %808 = vmatpush.msra.mxu0 0.0
        %809 = vmatpush.msra.mxu0 0.0
        %810 = vmatpush.msra.mxu0 0.0
        %811 = vmatpush.msra.mxu0 0.0
        %812 = vmatpush.msra.mxu0 0.0
        %813 = vmatpush.msra.mxu0 0.0
        %814 = vmatpush.msra.mxu0 0.0
        %815 = vmatpush.msra.mxu0 %v797
        %816 = vmatpush.msra.mxu0 %v796
        %817 = vmatpush.msra.mxu0 %v795
        %818 = vmatpush.msra.mxu0 %v794
        %819 = vmatmul.f32.gmra.mxu0 %v799
        %v820 = vpop.f32.mrf.mxu0
        %v821 = vadd.f32 0.0, %v820
        %822 = vmatmul.f32.gmra.mxu0 %v801
        %v823 = vpop.f32.mrf.mxu0
        %v824 = vadd.f32 0.0, %v823
        %825 = vdwg.mxu0
        %v826 = vsel %vm392, %v774, 0
        %v828 = vsel %vm392, %v775, 0
        %830 = vmatpush.msra.mxu0 0.0
        %831 = vmatpush.msra.mxu0 0.0
        %832 = vmatpush.msra.mxu0 0.0
        %833 = vmatpush.msra.mxu0 0.0
        %834 = vmatpush.msra.mxu0 0.0
        %835 = vmatpush.msra.mxu0 0.0
        %836 = vmatpush.msra.mxu0 0.0
        %837 = vmatpush.msra.mxu0 0.0
        %838 = vmatpush.msra.mxu0 0.0
        %839 = vmatpush.msra.mxu0 0.0
        %840 = vmatpush.msra.mxu0 0.0
        %841 = vmatpush.msra.mxu0 0.0
        %842 = vmatpush.msra.mxu0 %v780
        %843 = vmatpush.msra.mxu0 %v779
        %844 = vmatpush.msra.mxu0 %v778
        %845 = vmatpush.msra.mxu0 %v777
        %846 = vmatmul.f32.gmra.mxu0 %v826
        %v847 = vpop.f32.mrf.mxu0
        %v848 = vadd.f32 %v821, %v847
        %849 = vmatmul.f32.gmra.mxu0 %v828
        %v850 = vpop.f32.mrf.mxu0
        %v851 = vadd.f32 %v824, %v850
        %852 = vdwg.mxu0
        %s853 = scalar_lea.vmem [#allocation8], 160
        %v854 = vld [vmem:[%s853] sm:$0xff]
        %v855 = vld [vmem:[%s853 + $0x8] sm:$0xff]
        %v856 = vld [vmem:[%s853 + $0x10] sm:$0xff]
        %v857 = vld [vmem:[%s853 + $0x18] sm:$0xff]
        %v858 = vsel %vm392, %v790, 0
        %v861 = vsel %vm392, %v792, 0
        %863 = vmatpush.msra.mxu0 0.0
        %864 = vmatpush.msra.mxu0 0.0
        %865 = vmatpush.msra.mxu0 0.0
        %866 = vmatpush.msra.mxu0 0.0
        %867 = vmatpush.msra.mxu0 0.0
        %868 = vmatpush.msra.mxu0 0.0
        %869 = vmatpush.msra.mxu0 0.0
        %870 = vmatpush.msra.mxu0 0.0
        %871 = vmatpush.msra.mxu0 0.0
        %872 = vmatpush.msra.mxu0 0.0
        %873 = vmatpush.msra.mxu0 0.0
        %874 = vmatpush.msra.mxu0 0.0
        %875 = vmatpush.msra.mxu0 %v857
        %876 = vmatpush.msra.mxu0 %v856
        %877 = vmatpush.msra.mxu0 %v855
        %878 = vmatpush.msra.mxu0 %v854
        %879 = vmatmul.f32.gmra.mxu0 %v858
        %v880 = vpop.f32.mrf.mxu0
        %v881 = vadd.f32 0.0, %v880
        %882 = vmatmul.f32.gmra.mxu0 %v861
        %v883 = vpop.f32.mrf.mxu0
        %v884 = vadd.f32 0.0, %v883
        %885 = vdwg.mxu0
        %v886 = vadd.f32 %v848, %v881
        %v887 = vadd.f32 %v851, %v884
        %s888 = scalar_lea.vmem %s4, 1
        %v889 = vld [vmem:[%s888] sm:$0x1]
        %v891 = vperm.slane %v889, 0
        %v893 = vadd.f32 %v886, %v891
        %v894 = vadd.f32 %v887, %v891
        %v895 = vmax.f32 %v893, 0.0
        %v896 = vmax.f32 %v894, 0.0
        %s897 = scalar_lea.vmem [#allocation10], 32
        %v898 = vld [vmem:[%s897] sm:$0xff]
        %v899 = vld [vmem:[%s897 + $0x8] sm:$0xff]
        %v900 = vld [vmem:[%s897 + $0x10] sm:$0xff]
        %v901 = vld [vmem:[%s897 + $0x18] sm:$0xff]
        %v903 = vsel %vm392, %v895, 0
        %v906 = vsel %vm392, %v896, 0
        %908 = vmatpush.msra.mxu0 0.0
        %909 = vmatpush.msra.mxu0 0.0
        %910 = vmatpush.msra.mxu0 0.0
        %911 = vmatpush.msra.mxu0 0.0
        %912 = vmatpush.msra.mxu0 0.0
        %913 = vmatpush.msra.mxu0 0.0
        %914 = vmatpush.msra.mxu0 0.0
        %915 = vmatpush.msra.mxu0 0.0
        %916 = vmatpush.msra.mxu0 0.0
        %917 = vmatpush.msra.mxu0 0.0
        %918 = vmatpush.msra.mxu0 0.0
        %919 = vmatpush.msra.mxu0 0.0
        %920 = vmatpush.msra.mxu0 %v901
        %921 = vmatpush.msra.mxu0 %v900
        %922 = vmatpush.msra.mxu0 %v899
        %923 = vmatpush.msra.mxu0 %v898
        %924 = vmatmul.f32.gmra.mxu0 %v903
        %v925 = vpop.f32.mrf.mxu0
        %v926 = vadd.f32 0.0, %v925
        %927 = vmatmul.f32.gmra.mxu0 %v906
        %v928 = vpop.f32.mrf.mxu0
        %v929 = vadd.f32 0.0, %v928
        %930 = vdwg.mxu0
        %s931 = scalar_lea.vmem %s6, 1
        %v932 = vld [vmem:[%s931] sm:$0x1]
        %v934 = vperm.slane %v932, 0
        %v936 = vadd.f32 %v926, %v934
        %v937 = vadd.f32 %v929, %v934
        %v938 = vadd.f32 %v649, %v936
        %v939 = vadd.f32 %v650, %v937
        %940 = vst.msk [vmem:[%s364] sm:$0xff] %vm392, %v938
        %941 = vst.msk [vmem:[%s364 + $0x8] sm:$0xff] %vm392, %v939
        %s942 = sand.u32 %s186, 1
        %s943 = scalar_lea.sflag [#allocation4], %s942
        %s944 = sand.u32 %s186, 1
        %s945 = smul.addr %s944, 16
        %s946 = scalar_lea.vmem [#allocation11], %s945
        // Predicated region
        $region69: #{tpu_custom_call.1} parent=47 // pred_check
          %p947 = pneg %p196
        $region70: #{tpu_custom_call.1} parent=47 // pred_check_branch
          %949 = sbr.rel (%p947) target = $region72
        $region71: #{tpu_custom_call.1} parent=47 // pred_region
          %951 = vsyncadd %s943, 0
          %s952 = smul.addr %s26, 2
          %s953 = smul.addr %s952, 8
          %s954 = scalar_lea.hbm %s7, %s953
          %s955 = sshll.u32 %s946, 4
          %s956 = int_to_ptr.vmem [resolvable:$true] %s955
          %s957 = sshll.u32 %s954, 4
          %s958 = int_to_ptr.hbm [resolvable:$true] %s957
          %963 = dma.vmem_to_hbm [thread:$0]  %s956, 256, %s958, %s943, 128, 128, 8
        $region72: #{tpu_custom_call.1} parent=47 // pred_fallthru
          _
      $region48: #{tpu_custom_call.1} parent=5 // pred_fallthru
        _
      %p964 = scmp.le.s32.totalorder 2, %s21
      // Predicated region
      $region73: #{tpu_custom_call.1} parent=5 // pred_check
        %p965 = pneg %p964
      $region74: #{tpu_custom_call.1} parent=5 // pred_check_branch
        %967 = sbr.rel (%p965) target = $region76
      $region75: #{tpu_custom_call.1} parent=5 // pred_region
        %s968 = ssub.s32 %s21, 2
        // Predicated region
        $region77: #{tpu_custom_call.1} parent=75 // pred_check
          %p969 = pneg %p202
        $region78: #{tpu_custom_call.1} parent=75 // pred_check_branch
          %971 = sbr.rel (%p969) target = $region80
        $region79: #{tpu_custom_call.1} parent=75 // pred_region
          %s972 = sand.u32 %s187, 1
          %s973 = scalar_lea.sflag [#allocation4], %s972
          %s974 = sand.u32 %s187, 1
          %s975 = smul.addr %s974, 16
          %s976 = scalar_lea.vmem [#allocation11], %s975
          %978 = dma.done %s973, 256
        $region80: #{tpu_custom_call.1} parent=75 // pred_fallthru
          _
      $region76: #{tpu_custom_call.1} parent=5 // pred_fallthru
        _
    $region6: #{tpu_custom_call.1} parent=1 // loop_footer
      %s25 = sadd.s32 1, %s21
    $region7: #{tpu_custom_call.1} parent=1 // loop_footer_branch
      %20 = sbr.rel target = $region3
    $region8: #{tpu_custom_call.1} parent=1 // loop_exit
      _
    %979 = vsyncpa [#allocation3], 1
    %s980 = scalar_lea.sflag [#allocation3], 1
    %981 = vsyncpa %s980, 1
    %982 = vsyncpa [#allocation6], 1
    %983 = vsyncpa [#allocation9], 1
    %984 = vsyncpa [#allocation4], 1
    %s985 = scalar_lea.sflag [#allocation4], 1
    %986 = vsyncpa %s985, 1

// kernel: tpu_custom_call.1
$region0: #{tpu_custom_call.1}
  #allocation0 [shape = 'u32[]', space=smem, size = 0x4, offset = 0x4, fixed_abs, tag = 'smem constant byte address 0x4 - core index']
  #allocation1 [shape = 'u32[72,128]{1,0:T(1,128)}', space=vmem, size = 0x9000, scoped, tag = 'internal scratch']
  %s0 = inlined_call_operand.hbm [shape: f32[2,16,32], index: 0, kind: input, shape index: {}]
  %s1 = inlined_call_operand.hbm [shape: f32[2,3,32,32], index: 1, kind: input, shape index: {}]
  %s2 = inlined_call_operand.hbm [shape: f32[2,1,32], index: 2, kind: input, shape index: {}]
  %s3 = inlined_call_operand.hbm [shape: f32[2,3,32,32], index: 3, kind: input, shape index: {}]
  %s4 = inlined_call_operand.vmem [shape: f32[2,1,32], index: 4, kind: input, shape index: {}]
  %s5 = inlined_call_operand.hbm [shape: f32[2,32,32], index: 5, kind: input, shape index: {}]
  %s6 = inlined_call_operand.vmem [shape: f32[2,1,32], index: 6, kind: input, shape index: {}]
  %s7 = inlined_call_operand.hbm [shape: f32[2,16,32], index: 7, kind: output, shape index: {}]
  %s8 = sld [smem:[#allocation0]]
  $region81: #{tpu_custom_call.1} parent=0
    _
  %s10 = ssub.s32 1, %s8
  %s11 = scalar_select 0, %s10, %s8
  $region1: #{tpu_custom_call.1} parent=0
    #allocation2 [shape = 'u8[16384]{0}', space=vmem, size = 0x4000, scoped, tag = 'input window, operand 0']
    #allocation3 [shape = 's32[2]{0}', space=sflag, size = 0x8, scoped, tag = 'scoped memory for tpu_custom_call.1']
    #allocation4 [shape = 's32[2]{0}', space=sflag, size = 0x8, scoped, tag = 'scoped memory for tpu_custom_call.1']
    #allocation5 [shape = 'u8[98304]{0}', space=vmem, size = 0x18000, scoped, tag = 'input window, operand 1, single buffered']
    #allocation6 [shape = 's32[1]{0}', space=sflag, size = 0x4, scoped, tag = 'scoped memory for tpu_custom_call.1']
    #allocation7 [shape = 'u8[1024]{0}', space=vmem, size = 0x400, scoped, tag = 'input window, operand 2, single buffered']
    #allocation8 [shape = 'u8[98304]{0}', space=vmem, size = 0x18000, scoped, tag = 'input window, operand 3, single buffered']
    #allocation9 [shape = 's32[1]{0}', space=sflag, size = 0x4, scoped, tag = 'scoped memory for tpu_custom_call.1']
    #allocation10 [shape = 'u8[32768]{0}', space=vmem, size = 0x8000, scoped, tag = 'input window, operand 5, single buffered']
    #allocation11 [shape = 'u8[16384]{0}', space=vmem, size = 0x4000, scoped, tag = 'output window, operand 0']
    %12 = vsyncpa [#allocation3], 0
    %s13 = scalar_lea.sflag [#allocation3], 1
    %14 = vsyncpa %s13, 0
    %15 = vsyncpa [#allocation6], 0
    %16 = vsyncpa [#allocation9], 0
    %17 = vsyncpa [#allocation4], 0
    %s18 = scalar_lea.sflag [#allocation4], 1
    %19 = vsyncpa %s18, 0
    loop: start=0, step=1, limit=4
    $region2: #{tpu_custom_call.1} parent=1 // loop_pre_header
      _
    $region3: #{tpu_custom_call.1} parent=1 // loop_header
      %s21 = sphi 0, %s25
      %p22 = scmp.ge.s32.totalorder %s21, 4
      %s31 = sphi 0, %s33
      %s34 = sphi 0, %s31
      %s35 = sphi 0, %s34
      %s51 = sphi 0, %s35
      %s55 = sphi 0, %s55
      %s57 = sphi 0, %s55
      %s58 = sphi 0, %s57
      %s72 = sphi 0, %s58
      %s76 = sphi 0, %s76
      %s78 = sphi 0, %s76
      %s79 = sphi 0, %s78
      %s93 = sphi 0, %s79
      %s97 = sphi 0, %s97
      %s99 = sphi 0, %s97
      %s100 = sphi 0, %s99
      %s114 = sphi 0, %s100
      %s118 = sphi 0, %s118
      %s120 = sphi 0, %s118
      %s121 = sphi 0, %s120
      %s135 = sphi 0, %s121
      %s139 = sphi 0, %s139
      %s141 = sphi 0, %s139
      %s142 = sphi 0, %s141
      %s156 = sphi 0, %s142
      %s160 = sphi 0, %s160
      %s162 = sphi 0, %s160
      %s163 = sphi 0, %s162
      %s177 = sphi 0, %s163
      %s183 = sphi 0, %s185
      %s186 = sphi 0, %s183
      %s187 = sphi 0, %s186
      %s203 = sphi 0, %s187
    $region4: #{tpu_custom_call.1} parent=1 // loop_header_branch
      %24 = sbr.rel (%p22) target = $region8
    $region5: #{tpu_custom_call.1} parent=1 // loop_body
      %s26 = ssub.s32 %s21, 1
      %s27 = ssub.s32 %s21, 2
      %s28 = sadd.s32 %s21, 1
      %s29 = ssub.s32 %s21, %s28
      %p30 = scmp.eq.s32.totalorder %s29, 0
      %s32 = sadd.s32 %s31, 1
      %s33 = scalar_select %p30, %s31, %s32
      %p36 = pneg %p30
      %p37 = scmp.eq.s32.totalorder %s21, 1
      %p38 = por %p36, %p37
      %p39 = scmp.ne.s32.totalorder %s31, %s34
      %p40 = scmp.eq.s32.totalorder %s21, 0
      %p41 = por %p39, %p40
      %p42 = scmp.ne.s32.totalorder %s31, %s34
      %p43 = scmp.eq.s32.totalorder %s26, 1
      %p44 = por %p42, %p43
      %p45 = scmp.ne.s32.totalorder %s34, %s35
      %p46 = scmp.eq.s32.totalorder %s26, 0
      %p47 = por %p45, %p46
      %p48 = scmp.ne.s32.totalorder %s34, %s35
      %p49 = scmp.eq.s32.totalorder %s27, 1
      %p50 = por %p48, %p49
      %p52 = scmp.ne.s32.totalorder %s35, %s51
      %p53 = scmp.eq.s32.totalorder %s27, 0
      %p54 = por %p52, %p53
      %s56 = sadd.s32 %s55, 1
      %p59 = scmp.eq.s32.totalorder %s21, 1
      %p60 = scmp.ne.s32.totalorder %s55, %s57
      %p61 = scmp.eq.s32.totalorder %s21, 0
      %p62 = por %p60, %p61
      %p63 = scmp.ne.s32.totalorder %s55, %s57
      %p64 = scmp.eq.s32.totalorder %s26, 1
      %p65 = por %p63, %p64
      %p66 = scmp.ne.s32.totalorder %s57, %s58
      %p67 = scmp.eq.s32.totalorder %s26, 0
      %p68 = por %p66, %p67
      %p69 = scmp.ne.s32.totalorder %s57, %s58
      %p70 = scmp.eq.s32.totalorder %s27, 1
      %p71 = por %p69, %p70
      %p73 = scmp.ne.s32.totalorder %s58, %s72
      %p74 = scmp.eq.s32.totalorder %s27, 0
      %p75 = por %p73, %p74
      %s77 = sadd.s32 %s76, 1
      %p80 = scmp.eq.s32.totalorder %s21, 1
      %p81 = scmp.ne.s32.totalorder %s76, %s78
      %p82 = scmp.eq.s32.totalorder %s21, 0
      %p83 = por %p81, %p82
      %p84 = scmp.ne.s32.totalorder %s76, %s78
      %p85 = scmp.eq.s32.totalorder %s26, 1
      %p86 = por %p84, %p85
      %p87 = scmp.ne.s32.totalorder %s78, %s79
      %p88 = scmp.eq.s32.totalorder %s26, 0
      %p89 = por %p87, %p88
      %p90 = scmp.ne.s32.totalorder %s78, %s79
      %p91 = scmp.eq.s32.totalorder %s27, 1
      %p92 = por %p90, %p91
      %p94 = scmp.ne.s32.totalorder %s79, %s93
      %p95 = scmp.eq.s32.totalorder %s27, 0
      %p96 = por %p94, %p95
      %s98 = sadd.s32 %s97, 1
      %p101 = scmp.eq.s32.totalorder %s21, 1
      %p102 = scmp.ne.s32.totalorder %s97, %s99
      %p103 = scmp.eq.s32.totalorder %s21, 0
      %p104 = por %p102, %p103
      %p105 = scmp.ne.s32.totalorder %s97, %s99
      %p106 = scmp.eq.s32.totalorder %s26, 1
      %p107 = por %p105, %p106
      %p108 = scmp.ne.s32.totalorder %s99, %s100
      %p109 = scmp.eq.s32.totalorder %s26, 0
      %p110 = por %p108, %p109
      %p111 = scmp.ne.s32.totalorder %s99, %s100
      %p112 = scmp.eq.s32.totalorder %s27, 1
      %p113 = por %p111, %p112
      %p115 = scmp.ne.s32.totalorder %s100, %s114
      %p116 = scmp.eq.s32.totalorder %s27, 0
      %p117 = por %p115, %p116
      %s119 = sadd.s32 %s118, 1
      %p122 = scmp.eq.s32.totalorder %s21, 1
      %p123 = scmp.ne.s32.totalorder %s118, %s120
      %p124 = scmp.eq.s32.totalorder %s21, 0
      %p125 = por %p123, %p124
      %p126 = scmp.ne.s32.totalorder %s118, %s120
      %p127 = scmp.eq.s32.totalorder %s26, 1
      %p128 = por %p126, %p127
      %p129 = scmp.ne.s32.totalorder %s120, %s121
      %p130 = scmp.eq.s32.totalorder %s26, 0
      %p131 = por %p129, %p130
      %p132 = scmp.ne.s32.totalorder %s120, %s121
      %p133 = scmp.eq.s32.totalorder %s27, 1
      %p134 = por %p132, %p133
      %p136 = scmp.ne.s32.totalorder %s121, %s135
      %p137 = scmp.eq.s32.totalorder %s27, 0
      %p138 = por %p136, %p137
      %s140 = sadd.s32 %s139, 1
      %p143 = scmp.eq.s32.totalorder %s21, 1
      %p144 = scmp.ne.s32.totalorder %s139, %s141
      %p145 = scmp.eq.s32.totalorder %s21, 0
      %p146 = por %p144, %p145
      %p147 = scmp.ne.s32.totalorder %s139, %s141
      %p148 = scmp.eq.s32.totalorder %s26, 1
      %p149 = por %p147, %p148
      %p150 = scmp.ne.s32.totalorder %s141, %s142
      %p151 = scmp.eq.s32.totalorder %s26, 0
      %p152 = por %p150, %p151
      %p153 = scmp.ne.s32.totalorder %s141, %s142
      %p154 = scmp.eq.s32.totalorder %s27, 1
      %p155 = por %p153, %p154
      %p157 = scmp.ne.s32.totalorder %s142, %s156
      %p158 = scmp.eq.s32.totalorder %s27, 0
      %p159 = por %p157, %p158
      %s161 = sadd.s32 %s160, 1
      %p164 = scmp.eq.s32.totalorder %s21, 1
      %p165 = scmp.ne.s32.totalorder %s160, %s162
      %p166 = scmp.eq.s32.totalorder %s21, 0
      %p167 = por %p165, %p166
      %p168 = scmp.ne.s32.totalorder %s160, %s162
      %p169 = scmp.eq.s32.totalorder %s26, 1
      %p170 = por %p168, %p169
      %p171 = scmp.ne.s32.totalorder %s162, %s163
      %p172 = scmp.eq.s32.totalorder %s26, 0
      %p173 = por %p171, %p172
      %p174 = scmp.ne.s32.totalorder %s162, %s163
      %p175 = scmp.eq.s32.totalorder %s27, 1
      %p176 = por %p174, %p175
      %p178 = scmp.ne.s32.totalorder %s163, %s177
      %p179 = scmp.eq.s32.totalorder %s27, 0
      %p180 = por %p178, %p179
      %s181 = ssub.s32 %s21, %s28
      %p182 = scmp.eq.s32.totalorder %s181, 0
      %s184 = sadd.s32 %s183, 1
      %s185 = scalar_select %p182, %s183, %s184
      %p188 = pneg %p182
      %p189 = scmp.eq.s32.totalorder %s21, 1
      %p190 = por %p188, %p189
      %p191 = scmp.ne.s32.totalorder %s183, %s186
      %p192 = scmp.eq.s32.totalorder %s21, 0
      %p193 = por %p191, %p192
      %p194 = scmp.ne.s32.totalorder %s183, %s186
      %p195 = scmp.eq.s32.totalorder %s26, 1
      %p196 = por %p194, %p195
      %p197 = scmp.ne.s32.totalorder %s186, %s187
      %p198 = scmp.eq.s32.totalorder %s26, 0
      %p199 = por %p197, %p198
      %p200 = scmp.ne.s32.totalorder %s186, %s187
      %p201 = scmp.eq.s32.totalorder %s27, 1
      %p202 = por %p200, %p201
      %p204 = scmp.ne.s32.totalorder %s187, %s203
      %p205 = scmp.eq.s32.totalorder %s27, 0
      %p206 = por %p204, %p205
      %p207 = scmp.le.s32.totalorder 1, %s21
      %p208 = scmp.lt.s32.totalorder %s21, 3
      %p209 = pnand %p207, %p208
      %p210 = pneg %p209
      // Predicated region
      $region9: #{tpu_custom_call.1} parent=5 // pred_check
        _
      $region10: #{tpu_custom_call.1} parent=5 // pred_check_branch
        %212 = sbr.rel (%p209) target = $region12
      $region11: #{tpu_custom_call.1} parent=5 // pred_region
        %s213 = ssub.s32 %s21, 1
        // Predicated region
        $region13: #{tpu_custom_call.1} parent=11 // pred_check
          %p214 = pneg %p68
        $region14: #{tpu_custom_call.1} parent=11 // pred_check_branch
          %216 = sbr.rel (%p214) target = $region16
        $region15: #{tpu_custom_call.1} parent=11 // pred_region
          %218 = vsyncadd [#allocation6], 0
          %s219 = sshll.u32 %s1, 4
          %s220 = int_to_ptr.hbm [resolvable:$true] %s219
          %s221 = sshll.u32 [#allocation5], 4
          %s222 = int_to_ptr.vmem [resolvable:$true] %s221
          %227 = dma.hbm_to_vmem [thread:$0]  %s220, 3072, %s222, [#allocation6], 128, 128, 8
        $region16: #{tpu_custom_call.1} parent=11 // pred_fallthru
          _
        // Predicated region
        $region17: #{tpu_custom_call.1} parent=11 // pred_check
          %p228 = pneg %p89
        $region18: #{tpu_custom_call.1} parent=11 // pred_check_branch
          %230 = sbr.rel (%p228) target = $region20
        $region19: #{tpu_custom_call.1} parent=11 // pred_region
          %232 = vsyncadd [#allocation6], 0
          %s233 = sshll.u32 %s2, 4
          %s234 = int_to_ptr.hbm [resolvable:$true] %s233
          %s235 = sshll.u32 [#allocation7], 4
          %s236 = int_to_ptr.vmem [resolvable:$true] %s235
          %241 = dma.hbm_to_vmem [thread:$0]  %s234, 32, %s236, [#allocation6], 16, 16, 1
        $region20: #{tpu_custom_call.1} parent=11 // pred_fallthru
          _
        // Predicated region
        $region21: #{tpu_custom_call.1} parent=11 // pred_check
          %p242 = pneg %p110
        $region22: #{tpu_custom_call.1} parent=11 // pred_check_branch
          %244 = sbr.rel (%p242) target = $region24
        $region23: #{tpu_custom_call.1} parent=11 // pred_region
          %246 = vsyncadd [#allocation9], 0
          %s247 = sshll.u32 %s3, 4
          %s248 = int_to_ptr.hbm [resolvable:$true] %s247
          %s249 = sshll.u32 [#allocation8], 4
          %s250 = int_to_ptr.vmem [resolvable:$true] %s249
          %255 = dma.hbm_to_vmem [thread:$0]  %s248, 3072, %s250, [#allocation9], 128, 128, 8
        $region24: #{tpu_custom_call.1} parent=11 // pred_fallthru
          _
        // Predicated region
        $region25: #{tpu_custom_call.1} parent=11 // pred_check
          %p256 = pneg %p131
        $region26: #{tpu_custom_call.1} parent=11 // pred_check_branch
          %258 = sbr.rel (%p256) target = $region28
        $region27: #{tpu_custom_call.1} parent=11 // pred_region
          _
        $region28: #{tpu_custom_call.1} parent=11 // pred_fallthru
          _
        // Predicated region
        $region29: #{tpu_custom_call.1} parent=11 // pred_check
          %p259 = pneg %p152
        $region30: #{tpu_custom_call.1} parent=11 // pred_check_branch
          %261 = sbr.rel (%p259) target = $region32
        $region31: #{tpu_custom_call.1} parent=11 // pred_region
          %263 = vsyncadd [#allocation9], 0
          %s264 = sshll.u32 %s5, 4
          %s265 = int_to_ptr.hbm [resolvable:$true] %s264
          %s266 = sshll.u32 [#allocation10], 4
          %s267 = int_to_ptr.vmem [resolvable:$true] %s266
          %272 = dma.hbm_to_vmem [thread:$0]  %s265, 1024, %s267, [#allocation9], 128, 128, 8
        $region32: #{tpu_custom_call.1} parent=11 // pred_fallthru
          _
        // Predicated region
        $region33: #{tpu_custom_call.1} parent=11 // pred_check
          %p273 = pneg %p173
        $region34: #{tpu_custom_call.1} parent=11 // pred_check_branch
          %275 = sbr.rel (%p273) target = $region36
        $region35: #{tpu_custom_call.1} parent=11 // pred_region
          _
        $region36: #{tpu_custom_call.1} parent=11 // pred_fallthru
          _
      $region12: #{tpu_custom_call.1} parent=5 // pred_fallthru
        _
      %p276 = scmp.lt.s32.totalorder %s21, 2
      // Predicated region
      $region37: #{tpu_custom_call.1} parent=5 // pred_check
        %p277 = pneg %p276
      $region38: #{tpu_custom_call.1} parent=5 // pred_check_branch
        %279 = sbr.rel (%p277) target = $region40
      $region39: #{tpu_custom_call.1} parent=5 // pred_region
        // Predicated region
        $region41: #{tpu_custom_call.1} parent=39 // pred_check
          %p280 = pneg %p41
        $region42: #{tpu_custom_call.1} parent=39 // pred_check_branch
          %282 = sbr.rel (%p280) target = $region44
        $region43: #{tpu_custom_call.1} parent=39 // pred_region
          %s283 = sand.u32 %s31, 1
          %s284 = scalar_lea.sflag [#allocation3], %s283
          %s285 = sand.u32 %s31, 1
          %s286 = smul.addr %s285, 16
          %s287 = scalar_lea.vmem [#allocation2], %s286
          %289 = vsyncadd %s284, 0
          %s290 = smul.addr %s21, 2
          %s291 = smul.addr %s290, 8
          %s292 = scalar_lea.hbm %s0, %s291
          %s293 = sshll.u32 %s292, 4
          %s294 = int_to_ptr.hbm [resolvable:$true] %s293
          %s295 = sshll.u32 %s287, 4
          %s296 = int_to_ptr.vmem [resolvable:$true] %s295
          %301 = dma.hbm_to_vmem [thread:$0]  %s294, 256, %s296, %s284, 128, 128, 8
        $region44: #{tpu_custom_call.1} parent=39 // pred_fallthru
          _
      $region40: #{tpu_custom_call.1} parent=5 // pred_fallthru
        _
      %p302 = scmp.le.s32.totalorder 1, %s21
      %p303 = scmp.lt.s32.totalorder %s21, 3
      %p304 = pnand %p302, %p303
      %p305 = pneg %p304
      // Predicated region
      $region45: #{tpu_custom_call.1} parent=5 // pred_check
        _
      $region46: #{tpu_custom_call.1} parent=5 // pred_check_branch
        %307 = sbr.rel (%p304) target = $region48
      $region47: #{tpu_custom_call.1} parent=5 // pred_region
        %s308 = ssub.s32 %s21, 1
        %s309 = sand.u32 %s34, 1
        %s310 = scalar_lea.sflag [#allocation3], %s309
        %s311 = sand.u32 %s34, 1
        %s312 = smul.addr %s311, 16
        %s313 = scalar_lea.vmem [#allocation2], %s312
        // Predicated region
        $region49: #{tpu_custom_call.1} parent=47 // pred_check
          %p314 = pneg %p47
        $region50: #{tpu_custom_call.1} parent=47 // pred_check_branch
          %316 = sbr.rel (%p314) target = $region52
        $region51: #{tpu_custom_call.1} parent=47 // pred_region
          %318 = dma.done %s310, 256
        $region52: #{tpu_custom_call.1} parent=47 // pred_fallthru
          _
        // Predicated region
        $region53: #{tpu_custom_call.1} parent=47 // pred_check
          %p319 = pneg %p68
        $region54: #{tpu_custom_call.1} parent=47 // pred_check_branch
          %321 = sbr.rel (%p319) target = $region56
        $region55: #{tpu_custom_call.1} parent=47 // pred_region
          %323 = dma.done [#allocation6], 3072
        $region56: #{tpu_custom_call.1} parent=47 // pred_fallthru
          _
        // Predicated region
        $region57: #{tpu_custom_call.1} parent=47 // pred_check
          %p324 = pneg %p89
        $region58: #{tpu_custom_call.1} parent=47 // pred_check_branch
          %326 = sbr.rel (%p324) target = $region60
        $region59: #{tpu_custom_call.1} parent=47 // pred_region
          %328 = dma.done [#allocation6], 32
        $region60: #{tpu_custom_call.1} parent=47 // pred_fallthru
          _
        // Predicated region
        $region61: #{tpu_custom_call.1} parent=47 // pred_check
          %p329 = pneg %p110
        $region62: #{tpu_custom_call.1} parent=47 // pred_check_branch
          %331 = sbr.rel (%p329) target = $region64
        $region63: #{tpu_custom_call.1} parent=47 // pred_region
          %333 = dma.done [#allocation9], 3072
        $region64: #{tpu_custom_call.1} parent=47 // pred_fallthru
          _
        // Predicated region
        $region65: #{tpu_custom_call.1} parent=47 // pred_check
          %p334 = pneg %p152
        $region66: #{tpu_custom_call.1} parent=47 // pred_check_branch
          %336 = sbr.rel (%p334) target = $region68
        $region67: #{tpu_custom_call.1} parent=47 // pred_region
          %338 = dma.done [#allocation9], 1024
        $region68: #{tpu_custom_call.1} parent=47 // pred_fallthru
          _
        %s339 = sand.u32 %s34, 1
        %s340 = scalar_lea.sflag [#allocation3], %s339
        %s341 = sand.u32 %s34, 1
        %s342 = smul.addr %s341, 16
        %s343 = scalar_lea.vmem [#allocation2], %s342
        %p344 = pneg %p47
        %p345 = pneg %p44
        %p346 = pneg %p68
        %p347 = pneg %p65
        %p348 = pneg %p89
        %p349 = pneg %p86
        %p350 = pneg %p110
        %p351 = pneg %p107
        %p352 = pneg %p131
        %p353 = pneg %p128
        %p354 = pneg %p152
        %p355 = pneg %p149
        %p356 = pneg %p173
        %p357 = pneg %p170
        %p358 = pneg %p199
        %p359 = pneg %p196
        %s360 = sand.u32 %s186, 1
        %s361 = scalar_lea.sflag [#allocation4], %s360
        %s362 = sand.u32 %s186, 1
        %s363 = smul.addr %s362, 16
        %s364 = scalar_lea.vmem [#allocation11], %s363
        %v365 = vld [vmem:[%s313] sm:$0xff]
        %v366 = vld [vmem:[%s313 + $0x8] sm:$0xff]
        %v367 = vmax.f32 %v365, 0.0
        %v368 = vmax.f32 %v366, 0.0
        %s369 = scalar_lea.vmem [#allocation5], 32
        %v370 = vld [vmem:[%s369] sm:$0xff]
        %v371 = vld [vmem:[%s369 + $0x8] sm:$0xff]
        %v372 = vld [vmem:[%s369 + $0x10] sm:$0xff]
        %v373 = vld [vmem:[%s369 + $0x18] sm:$0xff]
        %vm376 = vcmask 1041408
        %v377 = vrot.slane %v367, 6
        %v378 = vrot.slane %v368, 6
        %v379 = vsel %vm376, %v377, %v378
        %v381 = vsel %vm376, 0.0, %v377
        %vm382 = vcmask 1045504
        %v383 = vrot.slane %v367, 2
        %v384 = vrot.slane %v368, 2
        %v385 = vsel %vm382, %v383, %v384
        %v387 = vsel %vm382, %v384, 0.0
        %v388 = vld [vmem:[#allocation5] sm:$0xff]
        %v389 = vld [vmem:[#allocation5 + $0x8] sm:$0xff]
        %v390 = vld [vmem:[#allocation5 + $0x10] sm:$0xff]
        %v391 = vld [vmem:[#allocation5 + $0x18] sm:$0xff]
        %vm392 = vcmask 261120
        %v394 = vsel %vm392, %v381, 0
        %v396 = vsel %vm392, %v379, 0
        %398 = vmatpush.msra.mxu0 0.0
        %399 = vmatpush.msra.mxu0 0.0
        %400 = vmatpush.msra.mxu0 0.0
        %401 = vmatpush.msra.mxu0 0.0
        %402 = vmatpush.msra.mxu0 0.0
        %403 = vmatpush.msra.mxu0 0.0
        %404 = vmatpush.msra.mxu0 0.0
        %405 = vmatpush.msra.mxu0 0.0
        %406 = vmatpush.msra.mxu0 0.0
        %407 = vmatpush.msra.mxu0 0.0
        %408 = vmatpush.msra.mxu0 0.0
        %409 = vmatpush.msra.mxu0 0.0
        %410 = vmatpush.msra.mxu0 %v391
        %411 = vmatpush.msra.mxu0 %v390
        %412 = vmatpush.msra.mxu0 %v389
        %413 = vmatpush.msra.mxu0 %v388
        %414 = vmatmul.f32.gmra.mxu0 %v394
        %v415 = vpop.f32.mrf.mxu0
        %v416 = vadd.f32 0.0, %v415
        %417 = vmatmul.f32.gmra.mxu0 %v396
        %v418 = vpop.f32.mrf.mxu0
        %v419 = vadd.f32 0.0, %v418
        %420 = vdwg.mxu0
        %v421 = vsel %vm392, %v367, 0
        %v423 = vsel %vm392, %v368, 0
        %425 = vmatpush.msra.mxu0 0.0
        %426 = vmatpush.msra.mxu0 0.0
        %427 = vmatpush.msra.mxu0 0.0
        %428 = vmatpush.msra.mxu0 0.0
        %429 = vmatpush.msra.mxu0 0.0
        %430 = vmatpush.msra.mxu0 0.0
        %431 = vmatpush.msra.mxu0 0.0
        %432 = vmatpush.msra.mxu0 0.0
        %433 = vmatpush.msra.mxu0 0.0
        %434 = vmatpush.msra.mxu0 0.0
        %435 = vmatpush.msra.mxu0 0.0
        %436 = vmatpush.msra.mxu0 0.0
        %437 = vmatpush.msra.mxu0 %v373
        %438 = vmatpush.msra.mxu0 %v372
        %439 = vmatpush.msra.mxu0 %v371
        %440 = vmatpush.msra.mxu0 %v370
        %441 = vmatmul.f32.gmra.mxu0 %v421
        %v442 = vpop.f32.mrf.mxu0
        %v443 = vadd.f32 %v416, %v442
        %444 = vmatmul.f32.gmra.mxu0 %v423
        %v445 = vpop.f32.mrf.mxu0
        %v446 = vadd.f32 %v419, %v445
        %447 = vdwg.mxu0
        %s448 = scalar_lea.vmem [#allocation5], 64
        %v449 = vld [vmem:[%s448] sm:$0xff]
        %v450 = vld [vmem:[%s448 + $0x8] sm:$0xff]
        %v451 = vld [vmem:[%s448 + $0x10] sm:$0xff]
        %v452 = vld [vmem:[%s448 + $0x18] sm:$0xff]
        %v453 = vsel %vm392, %v385, 0
        %v456 = vsel %vm392, %v387, 0
        %458 = vmatpush.msra.mxu0 0.0
        %459 = vmatpush.msra.mxu0 0.0
        %460 = vmatpush.msra.mxu0 0.0
        %461 = vmatpush.msra.mxu0 0.0
        %462 = vmatpush.msra.mxu0 0.0
        %463 = vmatpush.msra.mxu0 0.0
        %464 = vmatpush.msra.mxu0 0.0
        %465 = vmatpush.msra.mxu0 0.0
        %466 = vmatpush.msra.mxu0 0.0
        %467 = vmatpush.msra.mxu0 0.0
        %468 = vmatpush.msra.mxu0 0.0
        %469 = vmatpush.msra.mxu0 0.0
        %470 = vmatpush.msra.mxu0 %v452
        %471 = vmatpush.msra.mxu0 %v451
        %472 = vmatpush.msra.mxu0 %v450
        %473 = vmatpush.msra.mxu0 %v449
        %474 = vmatmul.f32.gmra.mxu0 %v453
        %v475 = vpop.f32.mrf.mxu0
        %v476 = vadd.f32 0.0, %v475
        %477 = vmatmul.f32.gmra.mxu0 %v456
        %v478 = vpop.f32.mrf.mxu0
        %v479 = vadd.f32 0.0, %v478
        %480 = vdwg.mxu0
        %v481 = vadd.f32 %v443, %v476
        %v482 = vadd.f32 %v446, %v479
        %v483 = vld [vmem:[#allocation7] sm:$0x1]
        %v485 = vperm.slane %v483, 0
        %v487 = vadd.f32 %v481, %v485
        %v488 = vadd.f32 %v482, %v485
        %v489 = vmax.f32 %v487, 0.0
        %v490 = vmax.f32 %v488, 0.0
        %s491 = scalar_lea.vmem [#allocation8], 32
        %v492 = vld [vmem:[%s491] sm:$0xff]
        %v493 = vld [vmem:[%s491 + $0x8] sm:$0xff]
        %v494 = vld [vmem:[%s491 + $0x10] sm:$0xff]
        %v495 = vld [vmem:[%s491 + $0x18] sm:$0xff]
        %v498 = vrot.slane %v489, 6
        %v499 = vrot.slane %v490, 6
        %v500 = vsel %vm376, %v498, %v499
        %v502 = vsel %vm376, 0.0, %v498
        %v503 = vrot.slane %v489, 2
        %v504 = vrot.slane %v490, 2
        %v505 = vsel %vm382, %v503, %v504
        %v507 = vsel %vm382, %v504, 0.0
        %v508 = vld [vmem:[#allocation8] sm:$0xff]
        %v509 = vld [vmem:[#allocation8 + $0x8] sm:$0xff]
        %v510 = vld [vmem:[#allocation8 + $0x10] sm:$0xff]
        %v511 = vld [vmem:[#allocation8 + $0x18] sm:$0xff]
        %v513 = vsel %vm392, %v502, 0
        %v515 = vsel %vm392, %v500, 0
        %517 = vmatpush.msra.mxu0 0.0
        %518 = vmatpush.msra.mxu0 0.0
        %519 = vmatpush.msra.mxu0 0.0
        %520 = vmatpush.msra.mxu0 0.0
        %521 = vmatpush.msra.mxu0 0.0
        %522 = vmatpush.msra.mxu0 0.0
        %523 = vmatpush.msra.mxu0 0.0
        %524 = vmatpush.msra.mxu0 0.0
        %525 = vmatpush.msra.mxu0 0.0
        %526 = vmatpush.msra.mxu0 0.0
        %527 = vmatpush.msra.mxu0 0.0
        %528 = vmatpush.msra.mxu0 0.0
        %529 = vmatpush.msra.mxu0 %v511
        %530 = vmatpush.msra.mxu0 %v510
        %531 = vmatpush.msra.mxu0 %v509
        %532 = vmatpush.msra.mxu0 %v508
        %533 = vmatmul.f32.gmra.mxu0 %v513
        %v534 = vpop.f32.mrf.mxu0
        %v535 = vadd.f32 0.0, %v534
        %536 = vmatmul.f32.gmra.mxu0 %v515
        %v537 = vpop.f32.mrf.mxu0
        %v538 = vadd.f32 0.0, %v537
        %539 = vdwg.mxu0
        %v540 = vsel %vm392, %v489, 0
        %v542 = vsel %vm392, %v490, 0
        %544 = vmatpush.msra.mxu0 0.0
        %545 = vmatpush.msra.mxu0 0.0
        %546 = vmatpush.msra.mxu0 0.0
        %547 = vmatpush.msra.mxu0 0.0
        %548 = vmatpush.msra.mxu0 0.0
        %549 = vmatpush.msra.mxu0 0.0
        %550 = vmatpush.msra.mxu0 0.0
        %551 = vmatpush.msra.mxu0 0.0
        %552 = vmatpush.msra.mxu0 0.0
        %553 = vmatpush.msra.mxu0 0.0
        %554 = vmatpush.msra.mxu0 0.0
        %555 = vmatpush.msra.mxu0 0.0
        %556 = vmatpush.msra.mxu0 %v495
        %557 = vmatpush.msra.mxu0 %v494
        %558 = vmatpush.msra.mxu0 %v493
        %559 = vmatpush.msra.mxu0 %v492
        %560 = vmatmul.f32.gmra.mxu0 %v540
        %v561 = vpop.f32.mrf.mxu0
        %v562 = vadd.f32 %v535, %v561
        %563 = vmatmul.f32.gmra.mxu0 %v542
        %v564 = vpop.f32.mrf.mxu0
        %v565 = vadd.f32 %v538, %v564
        %566 = vdwg.mxu0
        %s567 = scalar_lea.vmem [#allocation8], 64
        %v568 = vld [vmem:[%s567] sm:$0xff]
        %v569 = vld [vmem:[%s567 + $0x8] sm:$0xff]
        %v570 = vld [vmem:[%s567 + $0x10] sm:$0xff]
        %v571 = vld [vmem:[%s567 + $0x18] sm:$0xff]
        %v572 = vsel %vm392, %v505, 0
        %v575 = vsel %vm392, %v507, 0
        %577 = vmatpush.msra.mxu0 0.0
        %578 = vmatpush.msra.mxu0 0.0
        %579 = vmatpush.msra.mxu0 0.0
        %580 = vmatpush.msra.mxu0 0.0
        %581 = vmatpush.msra.mxu0 0.0
        %582 = vmatpush.msra.mxu0 0.0
        %583 = vmatpush.msra.mxu0 0.0
        %584 = vmatpush.msra.mxu0 0.0
        %585 = vmatpush.msra.mxu0 0.0
        %586 = vmatpush.msra.mxu0 0.0
        %587 = vmatpush.msra.mxu0 0.0
        %588 = vmatpush.msra.mxu0 0.0
        %589 = vmatpush.msra.mxu0 %v571
        %590 = vmatpush.msra.mxu0 %v570
        %591 = vmatpush.msra.mxu0 %v569
        %592 = vmatpush.msra.mxu0 %v568
        %593 = vmatmul.f32.gmra.mxu0 %v572
        %v594 = vpop.f32.mrf.mxu0
        %v595 = vadd.f32 0.0, %v594
        %596 = vmatmul.f32.gmra.mxu0 %v575
        %v597 = vpop.f32.mrf.mxu0
        %v598 = vadd.f32 0.0, %v597
        %599 = vdwg.mxu0
        %v600 = vadd.f32 %v562, %v595
        %v601 = vadd.f32 %v565, %v598
        %v602 = vld [vmem:[%s4] sm:$0x1]
        %v604 = vperm.slane %v602, 0
        %v606 = vadd.f32 %v600, %v604
        %v607 = vadd.f32 %v601, %v604
        %v608 = vmax.f32 %v606, 0.0
        %v609 = vmax.f32 %v607, 0.0
        %v610 = vld [vmem:[#allocation10] sm:$0xff]
        %v611 = vld [vmem:[#allocation10 + $0x8] sm:$0xff]
        %v612 = vld [vmem:[#allocation10 + $0x10] sm:$0xff]
        %v613 = vld [vmem:[#allocation10 + $0x18] sm:$0xff]
        %v615 = vsel %vm392, %v608, 0
        %v618 = vsel %vm392, %v609, 0
        %620 = vmatpush.msra.mxu0 0.0
        %621 = vmatpush.msra.mxu0 0.0
        %622 = vmatpush.msra.mxu0 0.0
        %623 = vmatpush.msra.mxu0 0.0
        %624 = vmatpush.msra.mxu0 0.0
        %625 = vmatpush.msra.mxu0 0.0
        %626 = vmatpush.msra.mxu0 0.0
        %627 = vmatpush.msra.mxu0 0.0
        %628 = vmatpush.msra.mxu0 0.0
        %629 = vmatpush.msra.mxu0 0.0
        %630 = vmatpush.msra.mxu0 0.0
        %631 = vmatpush.msra.mxu0 0.0
        %632 = vmatpush.msra.mxu0 %v613
        %633 = vmatpush.msra.mxu0 %v612
        %634 = vmatpush.msra.mxu0 %v611
        %635 = vmatpush.msra.mxu0 %v610
        %636 = vmatmul.f32.gmra.mxu0 %v615
        %v637 = vpop.f32.mrf.mxu0
        %v638 = vadd.f32 0.0, %v637
        %639 = vmatmul.f32.gmra.mxu0 %v618
        %v640 = vpop.f32.mrf.mxu0
        %v641 = vadd.f32 0.0, %v640
        %642 = vdwg.mxu0
        %v643 = vld [vmem:[%s6] sm:$0x1]
        %v645 = vperm.slane %v643, 0
        %v647 = vadd.f32 %v638, %v645
        %v648 = vadd.f32 %v641, %v645
        %v649 = vadd.f32 %v365, %v647
        %v650 = vadd.f32 %v366, %v648
        %v651 = vmax.f32 %v649, 0.0
        %v652 = vmax.f32 %v650, 0.0
        %s653 = scalar_lea.vmem [#allocation5], 128
        %v654 = vld [vmem:[%s653] sm:$0xff]
        %v655 = vld [vmem:[%s653 + $0x8] sm:$0xff]
        %v656 = vld [vmem:[%s653 + $0x10] sm:$0xff]
        %v657 = vld [vmem:[%s653 + $0x18] sm:$0xff]
        %vm660 = vcmask 1040384
        %v661 = vrot.slane %v651, 7
        %v662 = vrot.slane %v652, 7
        %v663 = vsel %vm660, %v661, %v662
        %v665 = vsel %vm660, 0.0, %v661
        %vm666 = vcmask 1046528
        %v667 = vrot.slane %v651, 1
        %v668 = vrot.slane %v652, 1
        %v669 = vsel %vm666, %v667, %v668
        %v671 = vsel %vm666, %v668, 0.0
        %s672 = scalar_lea.vmem [#allocation5], 96
        %v673 = vld [vmem:[%s672] sm:$0xff]
        %v674 = vld [vmem:[%s672 + $0x8] sm:$0xff]
        %v675 = vld [vmem:[%s672 + $0x10] sm:$0xff]
        %v676 = vld [vmem:[%s672 + $0x18] sm:$0xff]
        %v678 = vsel %vm392, %v665, 0
        %v680 = vsel %vm392, %v663, 0
        %682 = vmatpush.msra.mxu0 0.0
        %683 = vmatpush.msra.mxu0 0.0
        %684 = vmatpush.msra.mxu0 0.0
        %685 = vmatpush.msra.mxu0 0.0
        %686 = vmatpush.msra.mxu0 0.0
        %687 = vmatpush.msra.mxu0 0.0
        %688 = vmatpush.msra.mxu0 0.0
        %689 = vmatpush.msra.mxu0 0.0
        %690 = vmatpush.msra.mxu0 0.0
        %691 = vmatpush.msra.mxu0 0.0
        %692 = vmatpush.msra.mxu0 0.0
        %693 = vmatpush.msra.mxu0 0.0
        %694 = vmatpush.msra.mxu0 %v676
        %695 = vmatpush.msra.mxu0 %v675
        %696 = vmatpush.msra.mxu0 %v674
        %697 = vmatpush.msra.mxu0 %v673
        %698 = vmatmul.f32.gmra.mxu0 %v678
        %v699 = vpop.f32.mrf.mxu0
        %v700 = vadd.f32 0.0, %v699
        %701 = vmatmul.f32.gmra.mxu0 %v680
        %v702 = vpop.f32.mrf.mxu0
        %v703 = vadd.f32 0.0, %v702
        %704 = vdwg.mxu0
        %v705 = vsel %vm392, %v651, 0
        %v707 = vsel %vm392, %v652, 0
        %709 = vmatpush.msra.mxu0 0.0
        %710 = vmatpush.msra.mxu0 0.0
        %711 = vmatpush.msra.mxu0 0.0
        %712 = vmatpush.msra.mxu0 0.0
        %713 = vmatpush.msra.mxu0 0.0
        %714 = vmatpush.msra.mxu0 0.0
        %715 = vmatpush.msra.mxu0 0.0
        %716 = vmatpush.msra.mxu0 0.0
        %717 = vmatpush.msra.mxu0 0.0
        %718 = vmatpush.msra.mxu0 0.0
        %719 = vmatpush.msra.mxu0 0.0
        %720 = vmatpush.msra.mxu0 0.0
        %721 = vmatpush.msra.mxu0 %v657
        %722 = vmatpush.msra.mxu0 %v656
        %723 = vmatpush.msra.mxu0 %v655
        %724 = vmatpush.msra.mxu0 %v654
        %725 = vmatmul.f32.gmra.mxu0 %v705
        %v726 = vpop.f32.mrf.mxu0
        %v727 = vadd.f32 %v700, %v726
        %728 = vmatmul.f32.gmra.mxu0 %v707
        %v729 = vpop.f32.mrf.mxu0
        %v730 = vadd.f32 %v703, %v729
        %731 = vdwg.mxu0
        %s732 = scalar_lea.vmem [#allocation5], 160
        %v733 = vld [vmem:[%s732] sm:$0xff]
        %v734 = vld [vmem:[%s732 + $0x8] sm:$0xff]
        %v735 = vld [vmem:[%s732 + $0x10] sm:$0xff]
        %v736 = vld [vmem:[%s732 + $0x18] sm:$0xff]
        %v737 = vsel %vm392, %v669, 0
        %v740 = vsel %vm392, %v671, 0
        %742 = vmatpush.msra.mxu0 0.0
        %743 = vmatpush.msra.mxu0 0.0
        %744 = vmatpush.msra.mxu0 0.0
        %745 = vmatpush.msra.mxu0 0.0
        %746 = vmatpush.msra.mxu0 0.0
        %747 = vmatpush.msra.mxu0 0.0
        %748 = vmatpush.msra.mxu0 0.0
        %749 = vmatpush.msra.mxu0 0.0
        %750 = vmatpush.msra.mxu0 0.0
        %751 = vmatpush.msra.mxu0 0.0
        %752 = vmatpush.msra.mxu0 0.0
        %753 = vmatpush.msra.mxu0 0.0
        %754 = vmatpush.msra.mxu0 %v736
        %755 = vmatpush.msra.mxu0 %v735
        %756 = vmatpush.msra.mxu0 %v734
        %757 = vmatpush.msra.mxu0 %v733
        %758 = vmatmul.f32.gmra.mxu0 %v737
        %v759 = vpop.f32.mrf.mxu0
        %v760 = vadd.f32 0.0, %v759
        %761 = vmatmul.f32.gmra.mxu0 %v740
        %v762 = vpop.f32.mrf.mxu0
        %v763 = vadd.f32 0.0, %v762
        %764 = vdwg.mxu0
        %v765 = vadd.f32 %v727, %v760
        %v766 = vadd.f32 %v730, %v763
        %s767 = scalar_lea.vmem [#allocation7], 1
        %v768 = vld [vmem:[%s767] sm:$0x1]
        %v770 = vperm.slane %v768, 0
        %v772 = vadd.f32 %v765, %v770
        %v773 = vadd.f32 %v766, %v770
        %v774 = vmax.f32 %v772, 0.0
        %v775 = vmax.f32 %v773, 0.0
        %s776 = scalar_lea.vmem [#allocation8], 128
        %v777 = vld [vmem:[%s776] sm:$0xff]
        %v778 = vld [vmem:[%s776 + $0x8] sm:$0xff]
        %v779 = vld [vmem:[%s776 + $0x10] sm:$0xff]
        %v780 = vld [vmem:[%s776 + $0x18] sm:$0xff]
        %v783 = vrot.slane %v774, 7
        %v784 = vrot.slane %v775, 7
        %v785 = vsel %vm660, %v783, %v784
        %v787 = vsel %vm660, 0.0, %v783
        %v788 = vrot.slane %v774, 1
        %v789 = vrot.slane %v775, 1
        %v790 = vsel %vm666, %v788, %v789
        %v792 = vsel %vm666, %v789, 0.0
        %s793 = scalar_lea.vmem [#allocation8], 96
        %v794 = vld [vmem:[%s793] sm:$0xff]
        %v795 = vld [vmem:[%s793 + $0x8] sm:$0xff]
        %v796 = vld [vmem:[%s793 + $0x10] sm:$0xff]
        %v797 = vld [vmem:[%s793 + $0x18] sm:$0xff]
        %v799 = vsel %vm392, %v787, 0
        %v801 = vsel %vm392, %v785, 0
        %803 = vmatpush.msra.mxu0 0.0
        %804 = vmatpush.msra.mxu0 0.0
        %805 = vmatpush.msra.mxu0 0.0
        %806 = vmatpush.msra.mxu0 0.0
        %807 = vmatpush.msra.mxu0 0.0
        %808 = vmatpush.msra.mxu0 0.0
        %809 = vmatpush.msra.mxu0 0.0
        %810 = vmatpush.msra.mxu0 0.0
        %811 = vmatpush.msra.mxu0 0.0
        %812 = vmatpush.msra.mxu0 0.0
        %813 = vmatpush.msra.mxu0 0.0
        %814 = vmatpush.msra.mxu0 0.0
        %815 = vmatpush.msra.mxu0 %v797
        %816 = vmatpush.msra.mxu0 %v796
        %817 = vmatpush.msra.mxu0 %v795
        %818 = vmatpush.msra.mxu0 %v794
        %819 = vmatmul.f32.gmra.mxu0 %v799
        %v820 = vpop.f32.mrf.mxu0
        %v821 = vadd.f32 0.0, %v820
        %822 = vmatmul.f32.gmra.mxu0 %v801
        %v823 = vpop.f32.mrf.mxu0
        %v824 = vadd.f32 0.0, %v823
        %825 = vdwg.mxu0
        %v826 = vsel %vm392, %v774, 0
        %v828 = vsel %vm392, %v775, 0
        %830 = vmatpush.msra.mxu0 0.0
        %831 = vmatpush.msra.mxu0 0.0
        %832 = vmatpush.msra.mxu0 0.0
        %833 = vmatpush.msra.mxu0 0.0
        %834 = vmatpush.msra.mxu0 0.0
        %835 = vmatpush.msra.mxu0 0.0
        %836 = vmatpush.msra.mxu0 0.0
        %837 = vmatpush.msra.mxu0 0.0
        %838 = vmatpush.msra.mxu0 0.0
        %839 = vmatpush.msra.mxu0 0.0
        %840 = vmatpush.msra.mxu0 0.0
        %841 = vmatpush.msra.mxu0 0.0
        %842 = vmatpush.msra.mxu0 %v780
        %843 = vmatpush.msra.mxu0 %v779
        %844 = vmatpush.msra.mxu0 %v778
        %845 = vmatpush.msra.mxu0 %v777
        %846 = vmatmul.f32.gmra.mxu0 %v826
        %v847 = vpop.f32.mrf.mxu0
        %v848 = vadd.f32 %v821, %v847
        %849 = vmatmul.f32.gmra.mxu0 %v828
        %v850 = vpop.f32.mrf.mxu0
        %v851 = vadd.f32 %v824, %v850
        %852 = vdwg.mxu0
        %s853 = scalar_lea.vmem [#allocation8], 160
        %v854 = vld [vmem:[%s853] sm:$0xff]
        %v855 = vld [vmem:[%s853 + $0x8] sm:$0xff]
        %v856 = vld [vmem:[%s853 + $0x10] sm:$0xff]
        %v857 = vld [vmem:[%s853 + $0x18] sm:$0xff]
        %v858 = vsel %vm392, %v790, 0
        %v861 = vsel %vm392, %v792, 0
        %863 = vmatpush.msra.mxu0 0.0
        %864 = vmatpush.msra.mxu0 0.0
        %865 = vmatpush.msra.mxu0 0.0
        %866 = vmatpush.msra.mxu0 0.0
        %867 = vmatpush.msra.mxu0 0.0
        %868 = vmatpush.msra.mxu0 0.0
        %869 = vmatpush.msra.mxu0 0.0
        %870 = vmatpush.msra.mxu0 0.0
        %871 = vmatpush.msra.mxu0 0.0
        %872 = vmatpush.msra.mxu0 0.0
        %873 = vmatpush.msra.mxu0 0.0
        %874 = vmatpush.msra.mxu0 0.0
        %875 = vmatpush.msra.mxu0 %v857
        %876 = vmatpush.msra.mxu0 %v856
        %877 = vmatpush.msra.mxu0 %v855
        %878 = vmatpush.msra.mxu0 %v854
        %879 = vmatmul.f32.gmra.mxu0 %v858
        %v880 = vpop.f32.mrf.mxu0
        %v881 = vadd.f32 0.0, %v880
        %882 = vmatmul.f32.gmra.mxu0 %v861
        %v883 = vpop.f32.mrf.mxu0
        %v884 = vadd.f32 0.0, %v883
        %885 = vdwg.mxu0
        %v886 = vadd.f32 %v848, %v881
        %v887 = vadd.f32 %v851, %v884
        %s888 = scalar_lea.vmem %s4, 1
        %v889 = vld [vmem:[%s888] sm:$0x1]
        %v891 = vperm.slane %v889, 0
        %v893 = vadd.f32 %v886, %v891
        %v894 = vadd.f32 %v887, %v891
        %v895 = vmax.f32 %v893, 0.0
        %v896 = vmax.f32 %v894, 0.0
        %s897 = scalar_lea.vmem [#allocation10], 32
        %v898 = vld [vmem:[%s897] sm:$0xff]
        %v899 = vld [vmem:[%s897 + $0x8] sm:$0xff]
        %v900 = vld [vmem:[%s897 + $0x10] sm:$0xff]
        %v901 = vld [vmem:[%s897 + $0x18] sm:$0xff]
        %v903 = vsel %vm392, %v895, 0
        %v906 = vsel %vm392, %v896, 0
        %908 = vmatpush.msra.mxu0 0.0
        %909 = vmatpush.msra.mxu0 0.0
        %910 = vmatpush.msra.mxu0 0.0
        %911 = vmatpush.msra.mxu0 0.0
        %912 = vmatpush.msra.mxu0 0.0
        %913 = vmatpush.msra.mxu0 0.0
        %914 = vmatpush.msra.mxu0 0.0
        %915 = vmatpush.msra.mxu0 0.0
        %916 = vmatpush.msra.mxu0 0.0
        %917 = vmatpush.msra.mxu0 0.0
        %918 = vmatpush.msra.mxu0 0.0
        %919 = vmatpush.msra.mxu0 0.0
        %920 = vmatpush.msra.mxu0 %v901
        %921 = vmatpush.msra.mxu0 %v900
        %922 = vmatpush.msra.mxu0 %v899
        %923 = vmatpush.msra.mxu0 %v898
        %924 = vmatmul.f32.gmra.mxu0 %v903
        %v925 = vpop.f32.mrf.mxu0
        %v926 = vadd.f32 0.0, %v925
        %927 = vmatmul.f32.gmra.mxu0 %v906
        %v928 = vpop.f32.mrf.mxu0
        %v929 = vadd.f32 0.0, %v928
        %930 = vdwg.mxu0
        %s931 = scalar_lea.vmem %s6, 1
        %v932 = vld [vmem:[%s931] sm:$0x1]
        %v934 = vperm.slane %v932, 0
        %v936 = vadd.f32 %v926, %v934
        %v937 = vadd.f32 %v929, %v934
        %v938 = vadd.f32 %v649, %v936
        %v939 = vadd.f32 %v650, %v937
        %940 = vst.msk [vmem:[%s364] sm:$0xff] %vm392, %v938
        %941 = vst.msk [vmem:[%s364 + $0x8] sm:$0xff] %vm392, %v939
        %s942 = sand.u32 %s186, 1
        %s943 = scalar_lea.sflag [#allocation4], %s942
        %s944 = sand.u32 %s186, 1
        %s945 = smul.addr %s944, 16
        %s946 = scalar_lea.vmem [#allocation11], %s945
        // Predicated region
        $region69: #{tpu_custom_call.1} parent=47 // pred_check
          %p947 = pneg %p196
        $region70: #{tpu_custom_call.1} parent=47 // pred_check_branch
          %949 = sbr.rel (%p947) target = $region72
        $region71: #{tpu_custom_call.1} parent=47 // pred_region
          %951 = vsyncadd %s943, 0
          %s952 = smul.addr %s26, 2
          %s953 = smul.addr %s952, 8
          %s954 = scalar_lea.hbm %s7, %s953
          %s955 = sshll.u32 %s946, 4
          %s956 = int_to_ptr.vmem [resolvable:$true] %s955
          %s957 = sshll.u32 %s954, 4
          %s958 = int_to_ptr.hbm [resolvable:$true] %s957
          %963 = dma.vmem_to_hbm [thread:$0]  %s956, 256, %s958, %s943, 128, 128, 8
        $region72: #{tpu_custom_call.1} parent=47 // pred_fallthru
          _
      $region48: #{tpu_custom_call.1} parent=5 // pred_fallthru
        _
      %p964 = scmp.le.s32.totalorder 2, %s21
      // Predicated region
      $region73: #{tpu_custom_call.1} parent=5 // pred_check
        %p965 = pneg %p964
      $region74: #{tpu_custom_call.1} parent=5 // pred_check_branch
        %967 = sbr.rel (%p965) target = $region76
      $region75: #{tpu_custom_call.1} parent=5 // pred_region
        %s968 = ssub.s32 %s21, 2
        // Predicated region
        $region77: #{tpu_custom_call.1} parent=75 // pred_check
          %p969 = pneg %p202
        $region78: #{tpu_custom_call.1} parent=75 // pred_check_branch
          %971 = sbr.rel (%p969) target = $region80
        $region79: #{tpu_custom_call.1} parent=75 // pred_region
          %s972 = sand.u32 %s187, 1
          %s973 = scalar_lea.sflag [#allocation4], %s972
          %s974 = sand.u32 %s187, 1
          %s975 = smul.addr %s974, 16
          %s976 = scalar_lea.vmem [#allocation11], %s975
          %978 = dma.done %s973, 256
        $region80: #{tpu_custom_call.1} parent=75 // pred_fallthru
          _
      $region76: #{tpu_custom_call.1} parent=5 // pred_fallthru
        _
    $region6: #{tpu_custom_call.1} parent=1 // loop_footer
      %s25 = sadd.s32 1, %s21
    $region7: #{tpu_custom_call.1} parent=1 // loop_footer_branch
      %20 = sbr.rel target = $region3
    $region8: #{tpu_custom_call.1} parent=1 // loop_exit
      _
    %979 = vsyncpa [#allocation3], 1
    %s980 = scalar_lea.sflag [#allocation3], 1
    %981 = vsyncpa %s980, 1
    %982 = vsyncpa [#allocation6], 1
    %983 = vsyncpa [#allocation9], 1
    %984 = vsyncpa [#allocation4], 1
    %s985 = scalar_lea.sflag [#allocation4], 1
    %986 = vsyncpa %s985, 1

</llo_original>
